<compile_context>
chip_gen: v6e
topology: v6e:2x2x1
jax: 0.10.0
libtpu: 0.0.40
codegen_flags: <defaults>
</compile_context>

<pallas_src>
import jax
import jax.numpy as jnp
from jax.experimental import pallas as pl
from jax.experimental.pallas import tpu as pltpu

NEG_SLOPE = 0.01
BN_EPS = 1e-5
MXU_DTYPE = jnp.bfloat16       # MXU operand dtype; accumulation is always f32.


def build_banded_weights(w_hwio, W):
    """(3, 3, Cin, Cout) HWIO conv weight -> (3, W*Cin, W*Cout) banded matrices.

    B[ky][u*Cin + ci, x*Cout + co] = w[ky, kx, ci, co] with u = x + kx - 1;
    entries with u outside [0, W) are omitted (they hit the zero padding), so
    the kx taps and the left/right padding are absorbed into the matmul.
    """
    _, _, cin, cout = w_hwio.shape
    idx = jnp.arange(W)
    bands = []
    for ky in range(3):
        acc = jnp.zeros((W * cin, W * cout), w_hwio.dtype)
        for kx in range(3):
            sel = (idx[:, None] == (idx[None, :] + kx - 1)).astype(w_hwio.dtype)
            acc = acc + jnp.einsum("ux,io->uixo", sel,
                                   w_hwio[ky, kx]).reshape(W * cin, W * cout)
        bands.append(acc)
    return jnp.stack(bands)            # (3, W*cin, W*cout)


def make_fused_stack_kernel(num_blocks, nb, H, W, mxu_dtype):
    """Kernel processing `nb` batch images through `num_blocks` fused blocks.

    Refs (positional):
      x_ref                                : (nb, H, W*Cin)       lane-dense input
      [wb_k, scale_k, shift_k] * blocks    : (3, W*Ci, W*Co), (1, W*Co), (1, W*Co)
      o_ref                                : (nb, H, W*Cout)      lane-dense output
      pad_in                               : VMEM (nb, H+2, W*Cin)  row-halo scratch
      [pad_mid]                            : VMEM (nb, H+2, W*Cout) (blocks >= 2)
    """

    def kernel(*refs):
        x_ref = refs[0]
        o_ref = refs[1 + 3 * num_blocks]
        pad_in = refs[2 + 3 * num_blocks]
        pad_mid = refs[3 + 3 * num_blocks] if num_blocks > 1 else None

        # Zero ONLY the 1-row top/bottom halo (interior rows are fully
        # overwritten below; left/right padding lives inside the banded
        # weights).  Doing it every step costs ~2*(W*C) elements per scratch
        # and keeps the kernel correct under megacore grid splitting.
        def zero_border(ref):
            zrow = jnp.zeros((nb, 1, ref.shape[-1]), ref.dtype)
            ref[:, 0:1, :] = zrow
            ref[:, H + 1:H + 2, :] = zrow

        zero_border(pad_in)
        if pad_mid is not None:
            zero_border(pad_mid)

        # Ingest the already lane-dense input rows into the row-halo scratch.
        pad_in[:, 1:H + 1, :] = x_ref[...].astype(pad_in.dtype)

        cur = pad_in
        for blk in range(num_blocks):
            wb_ref = refs[1 + 3 * blk]   # (3, W*Ci, W*Co)  bf16 banded taps
            sc_ref = refs[2 + 3 * blk]   # (1, W*Co) f32    gamma/sqrt(var+eps)
            sh_ref = refs[3 + 3 * blk]   # (1, W*Co) f32    beta+(bias-mean)*scale
            out_lanes = wb_ref.shape[-1]
            last = blk == num_blocks - 1

            for n in range(nb):          # nb is 1 or 2 -> static unroll
                # 3 banded MXU matmuls (one per ky), f32 accumulation.
                acc = jnp.zeros((H, out_lanes), jnp.float32)
                for ky in range(3):
                    lhs = cur[n, ky:ky + H, :].astype(mxu_dtype)
                    acc = acc + jnp.dot(lhs, wb_ref[ky, :, :],
                                        preferred_element_type=jnp.float32)
                # Fused (conv bias + BatchNorm) affine + LeakyReLU(0.01), f32.
                y = acc * sc_ref[0, :] + sh_ref[0, :]
                y = jnp.where(y >= 0, y, NEG_SLOPE * y)
                if last:
                    o_ref[n, :, :] = y.astype(o_ref.dtype)          # lane-dense
                else:
                    pad_mid[n, 1:H + 1, :] = y.astype(pad_mid.dtype)
            if not last:
                cur = pad_mid

    return kernel


def _default_num_chunks(n_batch):
    """2-way batch split only on v7x (2 TensorCores/chip); 1 chunk otherwise."""
    try:
        kind = jax.devices()[0].device_kind.lower()
    except Exception:
        kind = ""
    if "v7" in kind and n_batch >= 2 and n_batch % 2 == 0:
        return 2
    return 1


def stacked_conv_layers_nhwc(x_nhwc, block_params, *, mxu_dtype=MXU_DTYPE,
                             num_chunks=None):
    """StackedConvLayers.forward (eval mode) — NHWC in, NHWC out."""
    N, H, W, Cin = x_nhwc.shape
    num_blocks = len(block_params)
    Cout = block_params[0][0].shape[-1]
    # nnU-Net invariant: every block outputs `output_feature_channels`; the
    # shared intermediate scratch relies on it.
    for i, (w, *_rest) in enumerate(block_params):
        assert w.shape[:2] == (3, 3), "only 3x3 convs (spec default) supported"
        assert w.shape[2] == (Cin if i == 0 else Cout), "channel chain mismatch"
        assert w.shape[3] == Cout, "all blocks must share output channels"

    if num_chunks is None:
        num_chunks = _default_num_chunks(N)
    assert N % num_chunks == 0
    nb = N // num_chunks

    # Free (metadata-only) reshape to the lane-dense layout; no transpose and
    # no extra HBM pass over the activation.
    x2d = x_nhwc.reshape(N, H, W * Cin)

    args = [x2d]
    in_specs = [pl.BlockSpec((nb, H, W * Cin), lambda g: (g, 0, 0))]
    for (w, b, gamma, beta, running_mean, running_var) in block_params:
        cout_b = w.shape[3]
        # Fold conv bias + BatchNorm(eval) into one affine: y*scale + shift.
        scale = gamma / jnp.sqrt(running_var + BN_EPS)
        shift = beta + (b - running_mean) * scale
        # One-time parameter prep (would be cached alongside the params in a
        # real deployment, not rebuilt per forward).
        args += [
            build_banded_weights(w, W).astype(mxu_dtype),     # (3, W*Ci, W*Co)
            jnp.tile(scale, W).reshape(1, W * cout_b).astype(jnp.float32),
            jnp.tile(shift, W).reshape(1, W * cout_b).astype(jnp.float32),
        ]
        in_specs += [
            # Full-array blocks with constant index_map: fetched once, resident
            # across the grid.  TODO(synk): at real nnU-Net channel counts mark
            # these single-buffered (pipeline_mode=pl.Buffered(1)) to halve
            # their VMEM footprint on v7x's 64 MiB.
            pl.BlockSpec(args[-3].shape, lambda g: (0, 0, 0)),
            pl.BlockSpec((1, W * cout_b), lambda g: (0, 0)),
            pl.BlockSpec((1, W * cout_b), lambda g: (0, 0)),
        ]

    scratch_shapes = [pltpu.VMEM((nb, H + 2, W * Cin), jnp.float32)]
    if num_blocks > 1:
        scratch_shapes.append(pltpu.VMEM((nb, H + 2, W * Cout), jnp.float32))

    out2d = pl.pallas_call(
        make_fused_stack_kernel(num_blocks, nb, H, W, mxu_dtype),
        out_shape=jax.ShapeDtypeStruct((N, H, W * Cout), x_nhwc.dtype),
        grid=(num_chunks,),
        in_specs=in_specs,
        out_specs=pl.BlockSpec((nb, H, W * Cout), lambda g: (g, 0, 0)),
        scratch_shapes=scratch_shapes,
        compiler_params=pltpu.CompilerParams(
            dimension_semantics=("parallel",)),    # batch chunks across v7x TCs
    )(*args)

    return out2d.reshape(N, H, W, Cout)            # free reshape back to NHWC


def stacked_conv_layers_nchw(x_nchw, block_params, **kwargs):
    """Drop-in parity with the PyTorch NCHW interface.  Each transpose is a
    full HBM round-trip of the activation; prefer the NHWC entry point."""
    x_nhwc = jnp.transpose(x_nchw, (0, 2, 3, 1))
    out_nhwc = stacked_conv_layers_nhwc(x_nhwc, block_params, **kwargs)
    return jnp.transpose(out_nhwc, (0, 3, 1, 2))


def init_block_params(key, cin, cout):
    """Deterministic synthetic params for one block (conv + BN), HWIO weight."""
    k_w, k_b, k_g, k_be, k_m, k_v = jax.random.split(key, 6)
    fan_in = cin * 3 * 3
    bound = 1.0 / jnp.sqrt(fan_in)
    w = jax.random.uniform(k_w, (3, 3, cin, cout), jnp.float32, -bound, bound)
    b = jax.random.uniform(k_b, (cout,), jnp.float32, -bound, bound)
    gamma = 1.0 + 0.1 * jax.random.normal(k_g, (cout,), jnp.float32)
    beta = 0.1 * jax.random.normal(k_be, (cout,), jnp.float32)
    running_mean = 0.1 * jax.random.normal(k_m, (cout,), jnp.float32)
    running_var = 1.0 + 0.1 * jax.random.uniform(k_v, (cout,), jnp.float32)
    return (w, b, gamma, beta, running_mean, running_var)


def reference_block_nhwc(x_nhwc, params):
    """Pure-JAX reference (lax conv) for correctness checking."""
    w, b, gamma, beta, running_mean, running_var = params
    y = jax.lax.conv_general_dilated(
        x_nhwc, w, window_strides=(1, 1), padding=((1, 1), (1, 1)),
        dimension_numbers=("NHWC", "HWIO", "NHWC"))
    y = y + b
    inv_std = 1.0 / jnp.sqrt(running_var + BN_EPS)
    y = (y - running_mean) * inv_std * gamma + beta
    return jnp.where(y >= 0, y, NEG_SLOPE * y)


if __name__ == "__main__":
    # StackedConvLayers(input_feature_channels=4, output_feature_channels=8,
    #                   num_convs=2, first_stride=None) on a (2, 4, 16, 16) input.
    N, CIN, COUT, H, W = 2, 4, 8, 16, 16
    NUM_CONVS = 2

    key = jax.random.PRNGKey(0)
    kx, *pkeys = jax.random.split(key, NUM_CONVS + 1)
    x_nchw = jax.random.normal(kx, (N, CIN, H, W), jnp.float32)  # PyTorch NCHW

    channels = [CIN] + [COUT] * NUM_CONVS
    block_params = [
        init_block_params(pkeys[i], channels[i], channels[i + 1])
        for i in range(NUM_CONVS)
    ]

    # NHWC fast path: the one-time transpose below is test setup only; the
    # wrapper itself does no transposes around the kernel.
    x_nhwc = jnp.transpose(x_nchw, (0, 2, 3, 1))
    out = jax.block_until_ready(stacked_conv_layers_nhwc(x_nhwc, block_params))
    assert out.shape == (N, H, W, COUT), out.shape

    # Pure-JAX reference (f32 end-to-end).
    ref = x_nhwc
    for params in block_params:
        ref = reference_block_nhwc(ref, params)

    # bf16 MXU operands (f32 accumulation) -> bf16-appropriate tolerance.
    max_err = float(jnp.max(jnp.abs(out - ref)))
    assert jnp.allclose(out, ref, rtol=3e-2, atol=3e-2), max_err

    print("KERNEL_OK")
</pallas_src>

<mosaic_0001>
module attributes {stable_mosaic.version = 11 : i64} {
  func.func @kernel(%arg0: i32, %arg1: memref<2x16x64xf32, #tpu.memory_space<vmem>>, %arg2: memref<3x64x128xbf16, #tpu.memory_space<vmem>>, %arg3: memref<1x128xf32, #tpu.memory_space<vmem>>, %arg4: memref<1x128xf32, #tpu.memory_space<vmem>>, %arg5: memref<3x128x128xbf16, #tpu.memory_space<vmem>>, %arg6: memref<1x128xf32, #tpu.memory_space<vmem>>, %arg7: memref<1x128xf32, #tpu.memory_space<vmem>>, %arg8: memref<2x16x128xf32, #tpu.memory_space<vmem>>, %arg9: memref<2x18x64xf32, #tpu.memory_space<vmem>>, %arg10: memref<2x18x128xf32, #tpu.memory_space<vmem>>) attributes {dimension_semantics = [#tpu.dimension_semantics<parallel>], iteration_bounds = array<i64: 1>, scalar_prefetch = 0 : i64, scratch_operands = 2 : i64, tpu.core_type = #tpu.core_type<tc>, window_params = [{transform_indices = @transform_0, window_bounds = array<i64: 2, 16, 64>}, {pipeline_mode = #tpu.pipeline_mode<synchronous>, transform_indices = @transform_1, window_bounds = array<i64: 3, 64, 128>}, {pipeline_mode = #tpu.pipeline_mode<synchronous>, transform_indices = @transform_2, window_bounds = array<i64: 1, 128>}, {pipeline_mode = #tpu.pipeline_mode<synchronous>, transform_indices = @transform_3, window_bounds = array<i64: 1, 128>}, {pipeline_mode = #tpu.pipeline_mode<synchronous>, transform_indices = @transform_4, window_bounds = array<i64: 3, 128, 128>}, {pipeline_mode = #tpu.pipeline_mode<synchronous>, transform_indices = @transform_5, window_bounds = array<i64: 1, 128>}, {pipeline_mode = #tpu.pipeline_mode<synchronous>, transform_indices = @transform_6, window_bounds = array<i64: 1, 128>}, {transform_indices = @transform_7, window_bounds = array<i64: 2, 16, 128>}]} {
    %cst = arith.constant 0.000000e+00 : f32
    %0 = vector.broadcast %cst : f32 to vector<2x1x64xf32>
    %c0 = arith.constant 0 : index
    %c0_0 = arith.constant 0 : index
    %c0_1 = arith.constant 0 : index
    %1 = vector.load %arg9[%c0, %c0_0, %c0_1] : memref<2x18x64xf32, #tpu.memory_space<vmem>>, vector<2x1x64xf32>
    tpu.vector_store %arg9[%c0, %c0_0, %c0_1], %0 {strides = array<i32>} : memref<2x18x64xf32, #tpu.memory_space<vmem>>, vector<2x1x64xf32>,
    %c0_2 = arith.constant 0 : index
    %c17 = arith.constant 17 : index
    %c0_3 = arith.constant 0 : index
    %2 = vector.load %arg9[%c0_2, %c17, %c0_3] : memref<2x18x64xf32, #tpu.memory_space<vmem>>, vector<2x1x64xf32>
    tpu.vector_store %arg9[%c0_2, %c17, %c0_3], %0 {strides = array<i32>} : memref<2x18x64xf32, #tpu.memory_space<vmem>>, vector<2x1x64xf32>,
    %cst_4 = arith.constant 0.000000e+00 : f32
    %3 = vector.broadcast %cst_4 : f32 to vector<2x1x128xf32>
    %c0_5 = arith.constant 0 : index
    %c0_6 = arith.constant 0 : index
    %c0_7 = arith.constant 0 : index
    %4 = vector.load %arg10[%c0_5, %c0_6, %c0_7] : memref<2x18x128xf32, #tpu.memory_space<vmem>>, vector<2x1x128xf32>
    tpu.vector_store %arg10[%c0_5, %c0_6, %c0_7], %3 {strides = array<i32>} : memref<2x18x128xf32, #tpu.memory_space<vmem>>, vector<2x1x128xf32>,
    %c0_8 = arith.constant 0 : index
    %c17_9 = arith.constant 17 : index
    %c0_10 = arith.constant 0 : index
    %5 = vector.load %arg10[%c0_8, %c17_9, %c0_10] : memref<2x18x128xf32, #tpu.memory_space<vmem>>, vector<2x1x128xf32>
    tpu.vector_store %arg10[%c0_8, %c17_9, %c0_10], %3 {strides = array<i32>} : memref<2x18x128xf32, #tpu.memory_space<vmem>>, vector<2x1x128xf32>,
    %c0_11 = arith.constant 0 : index
    %c0_12 = arith.constant 0 : index
    %c0_13 = arith.constant 0 : index
    %6 = vector.load %arg1[%c0_11, %c0_12, %c0_13] : memref<2x16x64xf32, #tpu.memory_space<vmem>>, vector<2x16x64xf32>
    %c0_14 = arith.constant 0 : index
    %c1 = arith.constant 1 : index
    %c0_15 = arith.constant 0 : index
    %7 = vector.load %arg9[%c0_14, %c1, %c0_15] : memref<2x18x64xf32, #tpu.memory_space<vmem>>, vector<2x16x64xf32>
    tpu.vector_store %arg9[%c0_14, %c1, %c0_15], %6 {strides = array<i32>} : memref<2x18x64xf32, #tpu.memory_space<vmem>>, vector<2x16x64xf32>,
    %cst_16 = arith.constant 0.000000e+00 : f32
    %8 = vector.broadcast %cst_16 : f32 to vector<16x128xf32>
    %c0_17 = arith.constant 0 : index
    %c0_18 = arith.constant 0 : index
    %c0_19 = arith.constant 0 : index
    %9 = vector.load %arg9[%c0_17, %c0_18, %c0_19] : memref<2x18x64xf32, #tpu.memory_space<vmem>>, vector<1x16x64xf32>
    %10 = vector.shape_cast %9 : vector<1x16x64xf32> to vector<16x64xf32>
    %11 = arith.truncf %10 : vector<16x64xf32> to vector<16x64xbf16>
    %c0_20 = arith.constant 0 : index
    %c0_21 = arith.constant 0 : index
    %c0_22 = arith.constant 0 : index
    %12 = vector.load %arg2[%c0_20, %c0_21, %c0_22] : memref<3x64x128xbf16, #tpu.memory_space<vmem>>, vector<1x64x128xbf16>
    %13 = vector.shape_cast %12 : vector<1x64x128xbf16> to vector<64x128xbf16>
    %cst_23 = arith.constant dense<0.000000e+00> : vector<16x128xf32>
    %14 = tpu.matmul %11, %13, %cst_23 {dimension_numbers = #tpu.dot_dimension_numbers<[1], [0], [0], [1], [0, 0, 1, 1], [], []>} : vector<16x64xbf16>, vector<64x128xbf16>, vector<16x128xf32> -> vector<16x128xf32>
    %15 = arith.addf %8, %14 : vector<16x128xf32>
    %c0_24 = arith.constant 0 : index
    %c1_25 = arith.constant 1 : index
    %c0_26 = arith.constant 0 : index
    %16 = vector.load %arg9[%c0_24, %c1_25, %c0_26] : memref<2x18x64xf32, #tpu.memory_space<vmem>>, vector<1x16x64xf32>
    %17 = vector.shape_cast %16 : vector<1x16x64xf32> to vector<16x64xf32>
    %18 = arith.truncf %17 : vector<16x64xf32> to vector<16x64xbf16>
    %c1_27 = arith.constant 1 : index
    %c0_28 = arith.constant 0 : index
    %c0_29 = arith.constant 0 : index
    %19 = vector.load %arg2[%c1_27, %c0_28, %c0_29] : memref<3x64x128xbf16, #tpu.memory_space<vmem>>, vector<1x64x128xbf16>
    %20 = vector.shape_cast %19 : vector<1x64x128xbf16> to vector<64x128xbf16>
    %cst_30 = arith.constant dense<0.000000e+00> : vector<16x128xf32>
    %21 = tpu.matmul %18, %20, %cst_30 {dimension_numbers = #tpu.dot_dimension_numbers<[1], [0], [0], [1], [0, 0, 1, 1], [], []>} : vector<16x64xbf16>, vector<64x128xbf16>, vector<16x128xf32> -> vector<16x128xf32>
    %22 = arith.addf %15, %21 : vector<16x128xf32>
    %c0_31 = arith.constant 0 : index
    %c2 = arith.constant 2 : index
    %c0_32 = arith.constant 0 : index
    %23 = vector.load %arg9[%c0_31, %c2, %c0_32] : memref<2x18x64xf32, #tpu.memory_space<vmem>>, vector<1x16x64xf32>
    %24 = vector.shape_cast %23 : vector<1x16x64xf32> to vector<16x64xf32>
    %25 = arith.truncf %24 : vector<16x64xf32> to vector<16x64xbf16>
    %c2_33 = arith.constant 2 : index
    %c0_34 = arith.constant 0 : index
    %c0_35 = arith.constant 0 : index
    %26 = vector.load %arg2[%c2_33, %c0_34, %c0_35] : memref<3x64x128xbf16, #tpu.memory_space<vmem>>, vector<1x64x128xbf16>
    %27 = vector.shape_cast %26 : vector<1x64x128xbf16> to vector<64x128xbf16>
    %cst_36 = arith.constant dense<0.000000e+00> : vector<16x128xf32>
    %28 = tpu.matmul %25, %27, %cst_36 {dimension_numbers = #tpu.dot_dimension_numbers<[1], [0], [0], [1], [0, 0, 1, 1], [], []>} : vector<16x64xbf16>, vector<64x128xbf16>, vector<16x128xf32> -> vector<16x128xf32>
    %29 = arith.addf %22, %28 : vector<16x128xf32>
    %c0_37 = arith.constant 0 : index
    %c0_38 = arith.constant 0 : index
    %30 = vector.load %arg3[%c0_37, %c0_38] : memref<1x128xf32, #tpu.memory_space<vmem>>, vector<1x128xf32>
    %31 = vector.shape_cast %30 : vector<1x128xf32> to vector<128xf32>
    %32 = vector.shape_cast %31 : vector<128xf32> to vector<1x128xf32>
    %33 = vector.broadcast %32 : vector<1x128xf32> to vector<16x128xf32>
    %34 = arith.mulf %29, %33 : vector<16x128xf32>
    %c0_39 = arith.constant 0 : index
    %c0_40 = arith.constant 0 : index
    %35 = vector.load %arg4[%c0_39, %c0_40] : memref<1x128xf32, #tpu.memory_space<vmem>>, vector<1x128xf32>
    %36 = vector.shape_cast %35 : vector<1x128xf32> to vector<128xf32>
    %37 = vector.shape_cast %36 : vector<128xf32> to vector<1x128xf32>
    %38 = vector.broadcast %37 : vector<1x128xf32> to vector<16x128xf32>
    %39 = arith.addf %34, %38 : vector<16x128xf32>
    %cst_41 = arith.constant 0.000000e+00 : f32
    %40 = vector.broadcast %cst_41 : f32 to vector<16x128xf32>
    %41 = arith.cmpf oge, %39, %40 : vector<16x128xf32>
    %cst_42 = arith.constant 0.00999999977 : f32
    %42 = vector.broadcast %cst_42 : f32 to vector<16x128xf32>
    %43 = arith.mulf %42, %39 : vector<16x128xf32>
    %44 = arith.select %41, %39, %43 : vector<16x128xi1>, vector<16x128xf32>
    %c0_43 = arith.constant 0 : index
    %c1_44 = arith.constant 1 : index
    %c0_45 = arith.constant 0 : index
    %45 = vector.load %arg10[%c0_43, %c1_44, %c0_45] : memref<2x18x128xf32, #tpu.memory_space<vmem>>, vector<1x16x128xf32>
    %46 = vector.shape_cast %45 : vector<1x16x128xf32> to vector<16x128xf32>
    %47 = vector.shape_cast %44 : vector<16x128xf32> to vector<1x16x128xf32>
    tpu.vector_store %arg10[%c0_43, %c1_44, %c0_45], %47 {strides = array<i32>} : memref<2x18x128xf32, #tpu.memory_space<vmem>>, vector<1x16x128xf32>,
    %cst_46 = arith.constant 0.000000e+00 : f32
    %48 = vector.broadcast %cst_46 : f32 to vector<16x128xf32>
    %c1_47 = arith.constant 1 : index
    %c0_48 = arith.constant 0 : index
    %c0_49 = arith.constant 0 : index
    %49 = vector.load %arg9[%c1_47, %c0_48, %c0_49] : memref<2x18x64xf32, #tpu.memory_space<vmem>>, vector<1x16x64xf32>
    %50 = vector.shape_cast %49 : vector<1x16x64xf32> to vector<16x64xf32>
    %51 = arith.truncf %50 : vector<16x64xf32> to vector<16x64xbf16>
    %c0_50 = arith.constant 0 : index
    %c0_51 = arith.constant 0 : index
    %c0_52 = arith.constant 0 : index
    %52 = vector.load %arg2[%c0_50, %c0_51, %c0_52] : memref<3x64x128xbf16, #tpu.memory_space<vmem>>, vector<1x64x128xbf16>
    %53 = vector.shape_cast %52 : vector<1x64x128xbf16> to vector<64x128xbf16>
    %cst_53 = arith.constant dense<0.000000e+00> : vector<16x128xf32>
    %54 = tpu.matmul %51, %53, %cst_53 {dimension_numbers = #tpu.dot_dimension_numbers<[1], [0], [0], [1], [0, 0, 1, 1], [], []>} : vector<16x64xbf16>, vector<64x128xbf16>, vector<16x128xf32> -> vector<16x128xf32>
    %55 = arith.addf %48, %54 : vector<16x128xf32>
    %c1_54 = arith.constant 1 : index
    %c1_55 = arith.constant 1 : index
    %c0_56 = arith.constant 0 : index
    %56 = vector.load %arg9[%c1_54, %c1_55, %c0_56] : memref<2x18x64xf32, #tpu.memory_space<vmem>>, vector<1x16x64xf32>
    %57 = vector.shape_cast %56 : vector<1x16x64xf32> to vector<16x64xf32>
    %58 = arith.truncf %57 : vector<16x64xf32> to vector<16x64xbf16>
    %c1_57 = arith.constant 1 : index
    %c0_58 = arith.constant 0 : index
    %c0_59 = arith.constant 0 : index
    %59 = vector.load %arg2[%c1_57, %c0_58, %c0_59] : memref<3x64x128xbf16, #tpu.memory_space<vmem>>, vector<1x64x128xbf16>
    %60 = vector.shape_cast %59 : vector<1x64x128xbf16> to vector<64x128xbf16>
    %cst_60 = arith.constant dense<0.000000e+00> : vector<16x128xf32>
    %61 = tpu.matmul %58, %60, %cst_60 {dimension_numbers = #tpu.dot_dimension_numbers<[1], [0], [0], [1], [0, 0, 1, 1], [], []>} : vector<16x64xbf16>, vector<64x128xbf16>, vector<16x128xf32> -> vector<16x128xf32>
    %62 = arith.addf %55, %61 : vector<16x128xf32>
    %c1_61 = arith.constant 1 : index
    %c2_62 = arith.constant 2 : index
    %c0_63 = arith.constant 0 : index
    %63 = vector.load %arg9[%c1_61, %c2_62, %c0_63] : memref<2x18x64xf32, #tpu.memory_space<vmem>>, vector<1x16x64xf32>
    %64 = vector.shape_cast %63 : vector<1x16x64xf32> to vector<16x64xf32>
    %65 = arith.truncf %64 : vector<16x64xf32> to vector<16x64xbf16>
    %c2_64 = arith.constant 2 : index
    %c0_65 = arith.constant 0 : index
    %c0_66 = arith.constant 0 : index
    %66 = vector.load %arg2[%c2_64, %c0_65, %c0_66] : memref<3x64x128xbf16, #tpu.memory_space<vmem>>, vector<1x64x128xbf16>
    %67 = vector.shape_cast %66 : vector<1x64x128xbf16> to vector<64x128xbf16>
    %cst_67 = arith.constant dense<0.000000e+00> : vector<16x128xf32>
    %68 = tpu.matmul %65, %67, %cst_67 {dimension_numbers = #tpu.dot_dimension_numbers<[1], [0], [0], [1], [0, 0, 1, 1], [], []>} : vector<16x64xbf16>, vector<64x128xbf16>, vector<16x128xf32> -> vector<16x128xf32>
    %69 = arith.addf %62, %68 : vector<16x128xf32>
    %c0_68 = arith.constant 0 : index
    %c0_69 = arith.constant 0 : index
    %70 = vector.load %arg3[%c0_68, %c0_69] : memref<1x128xf32, #tpu.memory_space<vmem>>, vector<1x128xf32>
    %71 = vector.shape_cast %70 : vector<1x128xf32> to vector<128xf32>
    %72 = vector.shape_cast %71 : vector<128xf32> to vector<1x128xf32>
    %73 = vector.broadcast %72 : vector<1x128xf32> to vector<16x128xf32>
    %74 = arith.mulf %69, %73 : vector<16x128xf32>
    %c0_70 = arith.constant 0 : index
    %c0_71 = arith.constant 0 : index
    %75 = vector.load %arg4[%c0_70, %c0_71] : memref<1x128xf32, #tpu.memory_space<vmem>>, vector<1x128xf32>
    %76 = vector.shape_cast %75 : vector<1x128xf32> to vector<128xf32>
    %77 = vector.shape_cast %76 : vector<128xf32> to vector<1x128xf32>
    %78 = vector.broadcast %77 : vector<1x128xf32> to vector<16x128xf32>
    %79 = arith.addf %74, %78 : vector<16x128xf32>
    %cst_72 = arith.constant 0.000000e+00 : f32
    %80 = vector.broadcast %cst_72 : f32 to vector<16x128xf32>
    %81 = arith.cmpf oge, %79, %80 : vector<16x128xf32>
    %cst_73 = arith.constant 0.00999999977 : f32
    %82 = vector.broadcast %cst_73 : f32 to vector<16x128xf32>
    %83 = arith.mulf %82, %79 : vector<16x128xf32>
    %84 = arith.select %81, %79, %83 : vector<16x128xi1>, vector<16x128xf32>
    %c1_74 = arith.constant 1 : index
    %c1_75 = arith.constant 1 : index
    %c0_76 = arith.constant 0 : index
    %85 = vector.load %arg10[%c1_74, %c1_75, %c0_76] : memref<2x18x128xf32, #tpu.memory_space<vmem>>, vector<1x16x128xf32>
    %86 = vector.shape_cast %85 : vector<1x16x128xf32> to vector<16x128xf32>
    %87 = vector.shape_cast %84 : vector<16x128xf32> to vector<1x16x128xf32>
    tpu.vector_store %arg10[%c1_74, %c1_75, %c0_76], %87 {strides = array<i32>} : memref<2x18x128xf32, #tpu.memory_space<vmem>>, vector<1x16x128xf32>,
    %cst_77 = arith.constant 0.000000e+00 : f32
    %88 = vector.broadcast %cst_77 : f32 to vector<16x128xf32>
    %c0_78 = arith.constant 0 : index
    %c0_79 = arith.constant 0 : index
    %c0_80 = arith.constant 0 : index
    %89 = vector.load %arg10[%c0_78, %c0_79, %c0_80] : memref<2x18x128xf32, #tpu.memory_space<vmem>>, vector<1x16x128xf32>
    %90 = vector.shape_cast %89 : vector<1x16x128xf32> to vector<16x128xf32>
    %91 = arith.truncf %90 : vector<16x128xf32> to vector<16x128xbf16>
    %c0_81 = arith.constant 0 : index
    %c0_82 = arith.constant 0 : index
    %c0_83 = arith.constant 0 : index
    %92 = vector.load %arg5[%c0_81, %c0_82, %c0_83] : memref<3x128x128xbf16, #tpu.memory_space<vmem>>, vector<1x128x128xbf16>
    %93 = vector.shape_cast %92 : vector<1x128x128xbf16> to vector<128x128xbf16>
    %cst_84 = arith.constant dense<0.000000e+00> : vector<16x128xf32>
    %94 = tpu.matmul %91, %93, %cst_84 {dimension_numbers = #tpu.dot_dimension_numbers<[1], [0], [0], [1], [0, 0, 1, 1], [], []>} : vector<16x128xbf16>, vector<128x128xbf16>, vector<16x128xf32> -> vector<16x128xf32>
    %95 = arith.addf %88, %94 : vector<16x128xf32>
    %c0_85 = arith.constant 0 : index
    %c1_86 = arith.constant 1 : index
    %c0_87 = arith.constant 0 : index
    %96 = vector.load %arg10[%c0_85, %c1_86, %c0_87] : memref<2x18x128xf32, #tpu.memory_space<vmem>>, vector<1x16x128xf32>
    %97 = vector.shape_cast %96 : vector<1x16x128xf32> to vector<16x128xf32>
    %98 = arith.truncf %97 : vector<16x128xf32> to vector<16x128xbf16>
    %c1_88 = arith.constant 1 : index
    %c0_89 = arith.constant 0 : index
    %c0_90 = arith.constant 0 : index
    %99 = vector.load %arg5[%c1_88, %c0_89, %c0_90] : memref<3x128x128xbf16, #tpu.memory_space<vmem>>, vector<1x128x128xbf16>
    %100 = vector.shape_cast %99 : vector<1x128x128xbf16> to vector<128x128xbf16>
    %cst_91 = arith.constant dense<0.000000e+00> : vector<16x128xf32>
    %101 = tpu.matmul %98, %100, %cst_91 {dimension_numbers = #tpu.dot_dimension_numbers<[1], [0], [0], [1], [0, 0, 1, 1], [], []>} : vector<16x128xbf16>, vector<128x128xbf16>, vector<16x128xf32> -> vector<16x128xf32>
    %102 = arith.addf %95, %101 : vector<16x128xf32>
    %c0_92 = arith.constant 0 : index
    %c2_93 = arith.constant 2 : index
    %c0_94 = arith.constant 0 : index
    %103 = vector.load %arg10[%c0_92, %c2_93, %c0_94] : memref<2x18x128xf32, #tpu.memory_space<vmem>>, vector<1x16x128xf32>
    %104 = vector.shape_cast %103 : vector<1x16x128xf32> to vector<16x128xf32>
    %105 = arith.truncf %104 : vector<16x128xf32> to vector<16x128xbf16>
    %c2_95 = arith.constant 2 : index
    %c0_96 = arith.constant 0 : index
    %c0_97 = arith.constant 0 : index
    %106 = vector.load %arg5[%c2_95, %c0_96, %c0_97] : memref<3x128x128xbf16, #tpu.memory_space<vmem>>, vector<1x128x128xbf16>
    %107 = vector.shape_cast %106 : vector<1x128x128xbf16> to vector<128x128xbf16>
    %cst_98 = arith.constant dense<0.000000e+00> : vector<16x128xf32>
    %108 = tpu.matmul %105, %107, %cst_98 {dimension_numbers = #tpu.dot_dimension_numbers<[1], [0], [0], [1], [0, 0, 1, 1], [], []>} : vector<16x128xbf16>, vector<128x128xbf16>, vector<16x128xf32> -> vector<16x128xf32>
    %109 = arith.addf %102, %108 : vector<16x128xf32>
    %c0_99 = arith.constant 0 : index
    %c0_100 = arith.constant 0 : index
    %110 = vector.load %arg6[%c0_99, %c0_100] : memref<1x128xf32, #tpu.memory_space<vmem>>, vector<1x128xf32>
    %111 = vector.shape_cast %110 : vector<1x128xf32> to vector<128xf32>
    %112 = vector.shape_cast %111 : vector<128xf32> to vector<1x128xf32>
    %113 = vector.broadcast %112 : vector<1x128xf32> to vector<16x128xf32>
    %114 = arith.mulf %109, %113 : vector<16x128xf32>
    %c0_101 = arith.constant 0 : index
    %c0_102 = arith.constant 0 : index
    %115 = vector.load %arg7[%c0_101, %c0_102] : memref<1x128xf32, #tpu.memory_space<vmem>>, vector<1x128xf32>
    %116 = vector.shape_cast %115 : vector<1x128xf32> to vector<128xf32>
    %117 = vector.shape_cast %116 : vector<128xf32> to vector<1x128xf32>
    %118 = vector.broadcast %117 : vector<1x128xf32> to vector<16x128xf32>
    %119 = arith.addf %114, %118 : vector<16x128xf32>
    %cst_103 = arith.constant 0.000000e+00 : f32
    %120 = vector.broadcast %cst_103 : f32 to vector<16x128xf32>
    %121 = arith.cmpf oge, %119, %120 : vector<16x128xf32>
    %cst_104 = arith.constant 0.00999999977 : f32
    %122 = vector.broadcast %cst_104 : f32 to vector<16x128xf32>
    %123 = arith.mulf %122, %119 : vector<16x128xf32>
    %124 = arith.select %121, %119, %123 : vector<16x128xi1>, vector<16x128xf32>
    %c0_105 = arith.constant 0 : index
    %c0_106 = arith.constant 0 : index
    %c0_107 = arith.constant 0 : index
    %125 = vector.load %arg8[%c0_105, %c0_106, %c0_107] : memref<2x16x128xf32, #tpu.memory_space<vmem>>, vector<1x16x128xf32>
    %126 = vector.shape_cast %125 : vector<1x16x128xf32> to vector<16x128xf32>
    %127 = vector.shape_cast %124 : vector<16x128xf32> to vector<1x16x128xf32>
    tpu.vector_store %arg8[%c0_105, %c0_106, %c0_107], %127 {strides = array<i32>} : memref<2x16x128xf32, #tpu.memory_space<vmem>>, vector<1x16x128xf32>,
    %cst_108 = arith.constant 0.000000e+00 : f32
    %128 = vector.broadcast %cst_108 : f32 to vector<16x128xf32>
    %c1_109 = arith.constant 1 : index
    %c0_110 = arith.constant 0 : index
    %c0_111 = arith.constant 0 : index
    %129 = vector.load %arg10[%c1_109, %c0_110, %c0_111] : memref<2x18x128xf32, #tpu.memory_space<vmem>>, vector<1x16x128xf32>
    %130 = vector.shape_cast %129 : vector<1x16x128xf32> to vector<16x128xf32>
    %131 = arith.truncf %130 : vector<16x128xf32> to vector<16x128xbf16>
    %c0_112 = arith.constant 0 : index
    %c0_113 = arith.constant 0 : index
    %c0_114 = arith.constant 0 : index
    %132 = vector.load %arg5[%c0_112, %c0_113, %c0_114] : memref<3x128x128xbf16, #tpu.memory_space<vmem>>, vector<1x128x128xbf16>
    %133 = vector.shape_cast %132 : vector<1x128x128xbf16> to vector<128x128xbf16>
    %cst_115 = arith.constant dense<0.000000e+00> : vector<16x128xf32>
    %134 = tpu.matmul %131, %133, %cst_115 {dimension_numbers = #tpu.dot_dimension_numbers<[1], [0], [0], [1], [0, 0, 1, 1], [], []>} : vector<16x128xbf16>, vector<128x128xbf16>, vector<16x128xf32> -> vector<16x128xf32>
    %135 = arith.addf %128, %134 : vector<16x128xf32>
    %c1_116 = arith.constant 1 : index
    %c1_117 = arith.constant 1 : index
    %c0_118 = arith.constant 0 : index
    %136 = vector.load %arg10[%c1_116, %c1_117, %c0_118] : memref<2x18x128xf32, #tpu.memory_space<vmem>>, vector<1x16x128xf32>
    %137 = vector.shape_cast %136 : vector<1x16x128xf32> to vector<16x128xf32>
    %138 = arith.truncf %137 : vector<16x128xf32> to vector<16x128xbf16>
    %c1_119 = arith.constant 1 : index
    %c0_120 = arith.constant 0 : index
    %c0_121 = arith.constant 0 : index
    %139 = vector.load %arg5[%c1_119, %c0_120, %c0_121] : memref<3x128x128xbf16, #tpu.memory_space<vmem>>, vector<1x128x128xbf16>
    %140 = vector.shape_cast %139 : vector<1x128x128xbf16> to vector<128x128xbf16>
    %cst_122 = arith.constant dense<0.000000e+00> : vector<16x128xf32>
    %141 = tpu.matmul %138, %140, %cst_122 {dimension_numbers = #tpu.dot_dimension_numbers<[1], [0], [0], [1], [0, 0, 1, 1], [], []>} : vector<16x128xbf16>, vector<128x128xbf16>, vector<16x128xf32> -> vector<16x128xf32>
    %142 = arith.addf %135, %141 : vector<16x128xf32>
    %c1_123 = arith.constant 1 : index
    %c2_124 = arith.constant 2 : index
    %c0_125 = arith.constant 0 : index
    %143 = vector.load %arg10[%c1_123, %c2_124, %c0_125] : memref<2x18x128xf32, #tpu.memory_space<vmem>>, vector<1x16x128xf32>
    %144 = vector.shape_cast %143 : vector<1x16x128xf32> to vector<16x128xf32>
    %145 = arith.truncf %144 : vector<16x128xf32> to vector<16x128xbf16>
    %c2_126 = arith.constant 2 : index
    %c0_127 = arith.constant 0 : index
    %c0_128 = arith.constant 0 : index
    %146 = vector.load %arg5[%c2_126, %c0_127, %c0_128] : memref<3x128x128xbf16, #tpu.memory_space<vmem>>, vector<1x128x128xbf16>
    %147 = vector.shape_cast %146 : vector<1x128x128xbf16> to vector<128x128xbf16>
    %cst_129 = arith.constant dense<0.000000e+00> : vector<16x128xf32>
    %148 = tpu.matmul %145, %147, %cst_129 {dimension_numbers = #tpu.dot_dimension_numbers<[1], [0], [0], [1], [0, 0, 1, 1], [], []>} : vector<16x128xbf16>, vector<128x128xbf16>, vector<16x128xf32> -> vector<16x128xf32>
    %149 = arith.addf %142, %148 : vector<16x128xf32>
    %c0_130 = arith.constant 0 : index
    %c0_131 = arith.constant 0 : index
    %150 = vector.load %arg6[%c0_130, %c0_131] : memref<1x128xf32, #tpu.memory_space<vmem>>, vector<1x128xf32>
    %151 = vector.shape_cast %150 : vector<1x128xf32> to vector<128xf32>
    %152 = vector.shape_cast %151 : vector<128xf32> to vector<1x128xf32>
    %153 = vector.broadcast %152 : vector<1x128xf32> to vector<16x128xf32>
    %154 = arith.mulf %149, %153 : vector<16x128xf32>
    %c0_132 = arith.constant 0 : index
    %c0_133 = arith.constant 0 : index
    %155 = vector.load %arg7[%c0_132, %c0_133] : memref<1x128xf32, #tpu.memory_space<vmem>>, vector<1x128xf32>
    %156 = vector.shape_cast %155 : vector<1x128xf32> to vector<128xf32>
    %157 = vector.shape_cast %156 : vector<128xf32> to vector<1x128xf32>
    %158 = vector.broadcast %157 : vector<1x128xf32> to vector<16x128xf32>
    %159 = arith.addf %154, %158 : vector<16x128xf32>
    %cst_134 = arith.constant 0.000000e+00 : f32
    %160 = vector.broadcast %cst_134 : f32 to vector<16x128xf32>
    %161 = arith.cmpf oge, %159, %160 : vector<16x128xf32>
    %cst_135 = arith.constant 0.00999999977 : f32
    %162 = vector.broadcast %cst_135 : f32 to vector<16x128xf32>
    %163 = arith.mulf %162, %159 : vector<16x128xf32>
    %164 = arith.select %161, %159, %163 : vector<16x128xi1>, vector<16x128xf32>
    %c1_136 = arith.constant 1 : index
    %c0_137 = arith.constant 0 : index
    %c0_138 = arith.constant 0 : index
    %165 = vector.load %arg8[%c1_136, %c0_137, %c0_138] : memref<2x16x128xf32, #tpu.memory_space<vmem>>, vector<1x16x128xf32>
    %166 = vector.shape_cast %165 : vector<1x16x128xf32> to vector<16x128xf32>
    %167 = vector.shape_cast %164 : vector<16x128xf32> to vector<1x16x128xf32>
    tpu.vector_store %arg8[%c1_136, %c0_137, %c0_138], %167 {strides = array<i32>} : memref<2x16x128xf32, #tpu.memory_space<vmem>>, vector<1x16x128xf32>,
    return
  }
  func.func @transform_0(%arg0: i32) -> (i32, i32, i32) {
    %c0_i32 = arith.constant 0 : i32
    %c0_i32_0 = arith.constant 0 : i32
    %c0_i32_1 = arith.constant 0 : i32
    return %arg0, %c0_i32, %c0_i32_0 : i32, i32, i32
  }
  func.func @transform_1(%arg0: i32) -> (i32, i32, i32) {
    %c0_i32 = arith.constant 0 : i32
    %c0_i32_0 = arith.constant 0 : i32
    %c0_i32_1 = arith.constant 0 : i32
    %c0_i32_2 = arith.constant 0 : i32
    return %c0_i32, %c0_i32_0, %c0_i32_1 : i32, i32, i32
  }
  func.func @transform_2(%arg0: i32) -> (i32, i32) {
    %c0_i32 = arith.constant 0 : i32
    %c0_i32_0 = arith.constant 0 : i32
    %c0_i32_1 = arith.constant 0 : i32
    return %c0_i32, %c0_i32_0 : i32, i32
  }
  func.func @transform_3(%arg0: i32) -> (i32, i32) {
    %c0_i32 = arith.constant 0 : i32
    %c0_i32_0 = arith.constant 0 : i32
    %c0_i32_1 = arith.constant 0 : i32
    return %c0_i32, %c0_i32_0 : i32, i32
  }
  func.func @transform_4(%arg0: i32) -> (i32, i32, i32) {
    %c0_i32 = arith.constant 0 : i32
    %c0_i32_0 = arith.constant 0 : i32
    %c0_i32_1 = arith.constant 0 : i32
    %c0_i32_2 = arith.constant 0 : i32
    return %c0_i32, %c0_i32_0, %c0_i32_1 : i32, i32, i32
  }
  func.func @transform_5(%arg0: i32) -> (i32, i32) {
    %c0_i32 = arith.constant 0 : i32
    %c0_i32_0 = arith.constant 0 : i32
    %c0_i32_1 = arith.constant 0 : i32
    return %c0_i32, %c0_i32_0 : i32, i32
  }
  func.func @transform_6(%arg0: i32) -> (i32, i32) {
    %c0_i32 = arith.constant 0 : i32
    %c0_i32_0 = arith.constant 0 : i32
    %c0_i32_1 = arith.constant 0 : i32
    return %c0_i32, %c0_i32_0 : i32, i32
  }
  func.func @transform_7(%arg0: i32) -> (i32, i32, i32) {
    %c0_i32 = arith.constant 0 : i32
    %c0_i32_0 = arith.constant 0 : i32
    %c0_i32_1 = arith.constant 0 : i32
    return %arg0, %c0_i32, %c0_i32_0 : i32, i32, i32
  }
}

</mosaic_0001>

<llo_original>
// kernel: tpu_custom_call.1
$region0: #{tpu_custom_call.1}
  #allocation0 [shape = 'u32[]', space=smem, size = 0x4, offset = 0x4, fixed_abs, tag = 'smem constant byte address 0x4 - core index']
  #allocation1 [shape = 'u32[144,128]{1,0:T(1,128)}', space=vmem, size = 0x12000, scoped, tag = 'internal scratch']
  #allocation2 [shape = 'f32[2,18,64]{2,1,0:T(8,128)}', space=vmem, size = 0x6000, scoped, tag = 'scratch operand']
  #allocation3 [shape = 'f32[2,18,128]{2,1,0:T(8,128)}', space=vmem, size = 0x6000, scoped, tag = 'scratch operand']
  %s0 = inlined_call_operand.hbm [shape: f32[2,16,64], index: 0, kind: input, shape index: {}]
  %s1 = inlined_call_operand.hbm [shape: bf16[3,64,128], index: 1, kind: input, shape index: {}]
  %s2 = inlined_call_operand.vmem [shape: f32[1,128], index: 2, kind: input, shape index: {}]
  %s3 = inlined_call_operand.vmem [shape: f32[1,128], index: 3, kind: input, shape index: {}]
  %s4 = inlined_call_operand.hbm [shape: bf16[3,128,128], index: 4, kind: input, shape index: {}]
  %s5 = inlined_call_operand.vmem [shape: f32[1,128], index: 5, kind: input, shape index: {}]
  %s6 = inlined_call_operand.vmem [shape: f32[1,128], index: 6, kind: input, shape index: {}]
  %s7 = inlined_call_operand.hbm [shape: f32[2,16,128], index: 7, kind: output, shape index: {}]
  %s8 = sld [smem:[#allocation0]]
  $region50: #{tpu_custom_call.1} parent=0
    _
  %s10 = ssub.s32 1, %s8
  %s11 = scalar_select 0, %s10, %s8
  $region1: #{tpu_custom_call.1} parent=0
    #allocation4 [shape = 'u8[16384]{0}', space=vmem, size = 0x4000, scoped, tag = 'input window, operand 0, single buffered']
    #allocation5 [shape = 's32[1]{0}', space=sflag, size = 0x4, scoped, tag = 'scoped memory for tpu_custom_call.1']
    #allocation6 [shape = 's32[1]{0}', space=sflag, size = 0x4, scoped, tag = 'scoped memory for tpu_custom_call.1']
    #allocation7 [shape = 'u8[49152]{0}', space=vmem, size = 0xc000, scoped, tag = 'input window, operand 1, single buffered']
    #allocation8 [shape = 's32[1]{0}', space=sflag, size = 0x4, scoped, tag = 'scoped memory for tpu_custom_call.1']
    #allocation9 [shape = 'u8[98304]{0}', space=vmem, size = 0x18000, scoped, tag = 'input window, operand 4, single buffered']
    #allocation10 [shape = 'u8[16384]{0}', space=vmem, size = 0x4000, scoped, tag = 'output window, operand 0, single buffered']
    %12 = vsyncpa [#allocation5], 0
    %13 = vsyncpa [#allocation8], 0
    %14 = vsyncpa [#allocation6], 0
    // Predicated region
    $region2: #{tpu_custom_call.1} parent=1 // pred_check
      _
    $region3: #{tpu_custom_call.1} parent=1 // pred_check_branch
      %16 = sbr.rel (0) target = $region5
    $region4: #{tpu_custom_call.1} parent=1 // pred_region
      %s18 = ssub.s32 512, 512
      %19 = vsyncadd [#allocation5], %s18
      %s20 = sshll.u32 [#allocation4], 4
      %s21 = int_to_ptr.vmem [resolvable:$true] %s20
      %26 = dma.hbm_to_vmem [thread:$0]  %s0, 512, %s21, [#allocation5], 128, 128, 8
    $region5: #{tpu_custom_call.1} parent=1 // pred_fallthru
      _
    // Predicated region
    $region6: #{tpu_custom_call.1} parent=1 // pred_check
      _
    $region7: #{tpu_custom_call.1} parent=1 // pred_check_branch
      %28 = sbr.rel (0) target = $region9
    $region8: #{tpu_custom_call.1} parent=1 // pred_region
      %s30 = ssub.s32 1536, 1536
      %31 = vsyncadd [#allocation8], %s30
      %s32 = sshll.u32 [#allocation7], 4
      %s33 = int_to_ptr.vmem [resolvable:$true] %s32
      %38 = dma.hbm_to_vmem [thread:$0]  %s1, 1536, %s33, [#allocation8], 64, 64, 4
    $region9: #{tpu_custom_call.1} parent=1 // pred_fallthru
      _
    // Predicated region
    $region10: #{tpu_custom_call.1} parent=1 // pred_check
      _
    $region11: #{tpu_custom_call.1} parent=1 // pred_check_branch
      %40 = sbr.rel (0) target = $region13
    $region12: #{tpu_custom_call.1} parent=1 // pred_region
      _
    $region13: #{tpu_custom_call.1} parent=1 // pred_fallthru
      _
    // Predicated region
    $region14: #{tpu_custom_call.1} parent=1 // pred_check
      _
    $region15: #{tpu_custom_call.1} parent=1 // pred_check_branch
      %42 = sbr.rel (0) target = $region17
    $region16: #{tpu_custom_call.1} parent=1 // pred_region
      _
    $region17: #{tpu_custom_call.1} parent=1 // pred_fallthru
      _
    // Predicated region
    $region18: #{tpu_custom_call.1} parent=1 // pred_check
      _
    $region19: #{tpu_custom_call.1} parent=1 // pred_check_branch
      %44 = sbr.rel (0) target = $region21
    $region20: #{tpu_custom_call.1} parent=1 // pred_region
      %s46 = ssub.s32 3072, 3072
      %47 = vsyncadd [#allocation8], %s46
      %s48 = sshll.u32 [#allocation9], 4
      %s49 = int_to_ptr.vmem [resolvable:$true] %s48
      %54 = dma.hbm_to_vmem [thread:$0]  %s4, 3072, %s49, [#allocation8], 64, 64, 4
    $region21: #{tpu_custom_call.1} parent=1 // pred_fallthru
      _
    // Predicated region
    $region22: #{tpu_custom_call.1} parent=1 // pred_check
      _
    $region23: #{tpu_custom_call.1} parent=1 // pred_check_branch
      %56 = sbr.rel (0) target = $region25
    $region24: #{tpu_custom_call.1} parent=1 // pred_region
      _
    $region25: #{tpu_custom_call.1} parent=1 // pred_fallthru
      _
    // Predicated region
    $region26: #{tpu_custom_call.1} parent=1 // pred_check
      _
    $region27: #{tpu_custom_call.1} parent=1 // pred_check_branch
      %58 = sbr.rel (0) target = $region29
    $region28: #{tpu_custom_call.1} parent=1 // pred_region
      _
    $region29: #{tpu_custom_call.1} parent=1 // pred_fallthru
      _
    // Predicated region
    $region30: #{tpu_custom_call.1} parent=1 // pred_check
      _
    $region31: #{tpu_custom_call.1} parent=1 // pred_check_branch
      %60 = sbr.rel (0) target = $region33
    $region32: #{tpu_custom_call.1} parent=1 // pred_region
      %61 = dma.done [#allocation5], 512
    $region33: #{tpu_custom_call.1} parent=1 // pred_fallthru
      _
    // Predicated region
    $region34: #{tpu_custom_call.1} parent=1 // pred_check
      _
    $region35: #{tpu_custom_call.1} parent=1 // pred_check_branch
      %63 = sbr.rel (0) target = $region37
    $region36: #{tpu_custom_call.1} parent=1 // pred_region
      %64 = dma.done [#allocation8], 1536
    $region37: #{tpu_custom_call.1} parent=1 // pred_fallthru
      _
    // Predicated region
    $region38: #{tpu_custom_call.1} parent=1 // pred_check
      _
    $region39: #{tpu_custom_call.1} parent=1 // pred_check_branch
      %66 = sbr.rel (0) target = $region41
    $region40: #{tpu_custom_call.1} parent=1 // pred_region
      %67 = dma.done [#allocation8], 3072
    $region41: #{tpu_custom_call.1} parent=1 // pred_fallthru
      _
    %vm69 = vcmask 516096
    %70 = vst.msk [vmem:[#allocation2] sm:$0x1] %vm69, 0.0
    %71 = vst.msk [vmem:[#allocation2 + $0x18] sm:$0x1] %vm69, 0.0
    %72 = vst.msk [vmem:[#allocation2 + $0x11] sm:$0x1] %vm69, 0.0
    %73 = vst.msk [vmem:[#allocation2 + $0x29] sm:$0x1] %vm69, 0.0
    %74 = vst [vmem:[#allocation3] sm:$0x1] 0.0
    %75 = vst [vmem:[#allocation3 + $0x18] sm:$0x1] 0.0
    %76 = vst [vmem:[#allocation3 + $0x11] sm:$0x1] 0.0
    %77 = vst [vmem:[#allocation3 + $0x29] sm:$0x1] 0.0
    %v78 = vld [vmem:[#allocation4] sm:$0xff]
    %v79 = vld [vmem:[#allocation4 + $0x8] sm:$0xff]
    %v80 = vld [vmem:[#allocation4 + $0x10] sm:$0xff]
    %v81 = vld [vmem:[#allocation4 + $0x18] sm:$0xff]
    %vm82 = vcmask 523264
    %83 = vst.msk [vmem:[#allocation2 + $0x1] sm:$0xff] %vm82, %v78
    %84 = vst.msk [vmem:[#allocation2 + $0x9] sm:$0xff] %vm82, %v79
    %85 = vst.msk [vmem:[#allocation2 + $0x19] sm:$0xff] %vm82, %v80
    %86 = vst.msk [vmem:[#allocation2 + $0x21] sm:$0xff] %vm82, %v81
    %v87 = vld [vmem:[#allocation2] sm:$0xff]
    %v88 = vld [vmem:[#allocation2 + $0x8] sm:$0xff]
    %v89 = vpack.c.bf16 %v88, %v87
    %v90 = vld [vmem:[#allocation7] sm:$0xf]
    %v91 = vld [vmem:[#allocation7 + $0x4] sm:$0xf]
    %v92 = vld [vmem:[#allocation7 + $0x8] sm:$0xf]
    %v93 = vld [vmem:[#allocation7 + $0xc] sm:$0xf]
    %v94 = vld [vmem:[#allocation7 + $0x10] sm:$0xf]
    %v95 = vld [vmem:[#allocation7 + $0x14] sm:$0xf]
    %v96 = vld [vmem:[#allocation7 + $0x18] sm:$0xf]
    %v97 = vld [vmem:[#allocation7 + $0x1c] sm:$0xf]
    %v98 = vld [vmem:[#allocation2 + $0x1] sm:$0xff]
    %v99 = vld [vmem:[#allocation2 + $0x9] sm:$0xff]
    %v100 = vpack.c.bf16 %v99, %v98
    %s101 = scalar_lea.vmem [#allocation7], 32
    %v102 = vld [vmem:[%s101] sm:$0xf]
    %v103 = vld [vmem:[%s101 + $0x4] sm:$0xf]
    %v104 = vld [vmem:[%s101 + $0x8] sm:$0xf]
    %v105 = vld [vmem:[%s101 + $0xc] sm:$0xf]
    %v106 = vld [vmem:[%s101 + $0x10] sm:$0xf]
    %v107 = vld [vmem:[%s101 + $0x14] sm:$0xf]
    %v108 = vld [vmem:[%s101 + $0x18] sm:$0xf]
    %v109 = vld [vmem:[%s101 + $0x1c] sm:$0xf]
    %v118 = vunpack.c.l.b16 %v102
    %v119 = vunpack.c.l.b16 %v103
    %v120 = vunpack.c.l.b16 %v104
    %v121 = vunpack.c.l.b16 %v105
    %v122 = vunpack.c.l.b16 %v106
    %v123 = vunpack.c.l.b16 %v107
    %v124 = vunpack.c.l.b16 %v108
    %v125 = vunpack.c.l.b16 %v109
    %v126 = vpack.c.b16 %v119, %v118
    %v127 = vpack.c.b16 %v121, %v120
    %v128 = vpack.c.b16 %v123, %v122
    %v129 = vpack.c.b16 %v125, %v124
    %v135 = vsel %vm82, %v100, 0
    %137 = vmatprep.subr.bf16.mxu0 0
    %138 = vmatpush1.bf16.msra.mxu0 0
    %139 = vmatprep.subr.bf16.mxu0 0
    %140 = vmatpush1.bf16.msra.mxu0 0
    %141 = vmatprep.subr.bf16.mxu0 0
    %142 = vmatpush1.bf16.msra.mxu0 0
    %143 = vmatprep.subr.bf16.mxu0 0
    %144 = vmatpush1.bf16.msra.mxu0 0
    %145 = vmatprep.subr.bf16.mxu0 0
    %146 = vmatpush1.bf16.msra.mxu0 %v129
    %147 = vmatprep.subr.bf16.mxu0 0
    %148 = vmatpush1.bf16.msra.mxu0 %v128
    %149 = vmatprep.subr.bf16.mxu0 0
    %150 = vmatpush1.bf16.msra.mxu0 %v127
    %151 = vmatprep.subr.bf16.mxu0 0
    %152 = vmatpush1.bf16.msra.mxu0 %v126
    %153 = vmatprep.subr.bf16.mxu0 0
    %154 = vmatpush2.bf16.msra.mxu0 0
    %155 = vmatprep.subr.bf16.mxu0 0
    %156 = vmatpush2.bf16.msra.mxu0 0
    %157 = vmatprep.subr.bf16.mxu0 0
    %158 = vmatpush2.bf16.msra.mxu0 0
    %159 = vmatprep.subr.bf16.mxu0 0
    %160 = vmatpush2.bf16.msra.mxu0 0
    %161 = vmatprep.subr.bf16.mxu0 0
    %162 = vmatpush2.bf16.msra.mxu0 0
    %163 = vmatprep.subr.bf16.mxu0 0
    %164 = vmatpush2.bf16.msra.mxu0 0
    %165 = vmatprep.subr.bf16.mxu0 0
    %166 = vmatpush2.bf16.msra.mxu0 0
    %167 = vmatprep.subr.bf16.mxu0 0
    %168 = vmatpush2.bf16.msra.mxu0 0
    %169 = vmatprep.mubr.bf16.mxu0 0
    %170 = vmatmul.mubr.bf16.gmra.mxu0 %v135
    %v171 = vpop.f32.mrf.mxu0
    %v172 = vadd.f32 0.0, %v171
    %v173 = vpop.f32.mrf.mxu0
    %v174 = vpop.f32.mrf.mxu0
    %v175 = vadd.f32 0.0, %v174
    %v176 = vpop.f32.mrf.mxu0
    %177 = vdwg.mxu0
    %v186 = vunpack.c.l.b16 %v90
    %v187 = vunpack.c.l.b16 %v91
    %v188 = vunpack.c.l.b16 %v92
    %v189 = vunpack.c.l.b16 %v93
    %v190 = vunpack.c.l.b16 %v94
    %v191 = vunpack.c.l.b16 %v95
    %v192 = vunpack.c.l.b16 %v96
    %v193 = vunpack.c.l.b16 %v97
    %v194 = vpack.c.b16 %v187, %v186
    %v195 = vpack.c.b16 %v189, %v188
    %v196 = vpack.c.b16 %v191, %v190
    %v197 = vpack.c.b16 %v193, %v192
    %v203 = vsel %vm82, %v89, 0
    %205 = vmatprep.subr.bf16.mxu0 0
    %206 = vmatpush1.bf16.msra.mxu0 0
    %207 = vmatprep.subr.bf16.mxu0 0
    %208 = vmatpush1.bf16.msra.mxu0 0
    %209 = vmatprep.subr.bf16.mxu0 0
    %210 = vmatpush1.bf16.msra.mxu0 0
    %211 = vmatprep.subr.bf16.mxu0 0
    %212 = vmatpush1.bf16.msra.mxu0 0
    %213 = vmatprep.subr.bf16.mxu0 0
    %214 = vmatpush1.bf16.msra.mxu0 %v197
    %215 = vmatprep.subr.bf16.mxu0 0
    %216 = vmatpush1.bf16.msra.mxu0 %v196
    %217 = vmatprep.subr.bf16.mxu0 0
    %218 = vmatpush1.bf16.msra.mxu0 %v195
    %219 = vmatprep.subr.bf16.mxu0 0
    %220 = vmatpush1.bf16.msra.mxu0 %v194
    %221 = vmatprep.subr.bf16.mxu0 0
    %222 = vmatpush2.bf16.msra.mxu0 0
    %223 = vmatprep.subr.bf16.mxu0 0
    %224 = vmatpush2.bf16.msra.mxu0 0
    %225 = vmatprep.subr.bf16.mxu0 0
    %226 = vmatpush2.bf16.msra.mxu0 0
    %227 = vmatprep.subr.bf16.mxu0 0
    %228 = vmatpush2.bf16.msra.mxu0 0
    %229 = vmatprep.subr.bf16.mxu0 0
    %230 = vmatpush2.bf16.msra.mxu0 0
    %231 = vmatprep.subr.bf16.mxu0 0
    %232 = vmatpush2.bf16.msra.mxu0 0
    %233 = vmatprep.subr.bf16.mxu0 0
    %234 = vmatpush2.bf16.msra.mxu0 0
    %235 = vmatprep.subr.bf16.mxu0 0
    %236 = vmatpush2.bf16.msra.mxu0 0
    %237 = vmatprep.mubr.bf16.mxu0 0
    %238 = vmatmul.mubr.bf16.gmra.mxu0 %v203
    %v239 = vpop.f32.mrf.mxu0
    %v240 = vadd.f32 %v172, %v239
    %v241 = vpop.f32.mrf.mxu0
    %v242 = vpop.f32.mrf.mxu0
    %v243 = vadd.f32 %v175, %v242
    %v244 = vpop.f32.mrf.mxu0
    %245 = vdwg.mxu0
    %v246 = vld [vmem:[#allocation2 + $0x2] sm:$0xff]
    %v247 = vld [vmem:[#allocation2 + $0xa] sm:$0xff]
    %v248 = vpack.c.bf16 %v247, %v246
    %s249 = scalar_lea.vmem [#allocation7], 64
    %v250 = vld [vmem:[%s249] sm:$0xf]
    %v251 = vld [vmem:[%s249 + $0x4] sm:$0xf]
    %v252 = vld [vmem:[%s249 + $0x8] sm:$0xf]
    %v253 = vld [vmem:[%s249 + $0xc] sm:$0xf]
    %v254 = vld [vmem:[%s249 + $0x10] sm:$0xf]
    %v255 = vld [vmem:[%s249 + $0x14] sm:$0xf]
    %v256 = vld [vmem:[%s249 + $0x18] sm:$0xf]
    %v257 = vld [vmem:[%s249 + $0x1c] sm:$0xf]
    %v266 = vunpack.c.l.b16 %v250
    %v267 = vunpack.c.l.b16 %v251
    %v268 = vunpack.c.l.b16 %v252
    %v269 = vunpack.c.l.b16 %v253
    %v270 = vunpack.c.l.b16 %v254
    %v271 = vunpack.c.l.b16 %v255
    %v272 = vunpack.c.l.b16 %v256
    %v273 = vunpack.c.l.b16 %v257
    %v274 = vpack.c.b16 %v267, %v266
    %v275 = vpack.c.b16 %v269, %v268
    %v276 = vpack.c.b16 %v271, %v270
    %v277 = vpack.c.b16 %v273, %v272
    %v283 = vsel %vm82, %v248, 0
    %285 = vmatprep.subr.bf16.mxu0 0
    %286 = vmatpush1.bf16.msra.mxu0 0
    %287 = vmatprep.subr.bf16.mxu0 0
    %288 = vmatpush1.bf16.msra.mxu0 0
    %289 = vmatprep.subr.bf16.mxu0 0
    %290 = vmatpush1.bf16.msra.mxu0 0
    %291 = vmatprep.subr.bf16.mxu0 0
    %292 = vmatpush1.bf16.msra.mxu0 0
    %293 = vmatprep.subr.bf16.mxu0 0
    %294 = vmatpush1.bf16.msra.mxu0 %v277
    %295 = vmatprep.subr.bf16.mxu0 0
    %296 = vmatpush1.bf16.msra.mxu0 %v276
    %297 = vmatprep.subr.bf16.mxu0 0
    %298 = vmatpush1.bf16.msra.mxu0 %v275
    %299 = vmatprep.subr.bf16.mxu0 0
    %300 = vmatpush1.bf16.msra.mxu0 %v274
    %301 = vmatprep.subr.bf16.mxu0 0
    %302 = vmatpush2.bf16.msra.mxu0 0
    %303 = vmatprep.subr.bf16.mxu0 0
    %304 = vmatpush2.bf16.msra.mxu0 0
    %305 = vmatprep.subr.bf16.mxu0 0
    %306 = vmatpush2.bf16.msra.mxu0 0
    %307 = vmatprep.subr.bf16.mxu0 0
    %308 = vmatpush2.bf16.msra.mxu0 0
    %309 = vmatprep.subr.bf16.mxu0 0
    %310 = vmatpush2.bf16.msra.mxu0 0
    %311 = vmatprep.subr.bf16.mxu0 0
    %312 = vmatpush2.bf16.msra.mxu0 0
    %313 = vmatprep.subr.bf16.mxu0 0
    %314 = vmatpush2.bf16.msra.mxu0 0
    %315 = vmatprep.subr.bf16.mxu0 0
    %316 = vmatpush2.bf16.msra.mxu0 0
    %317 = vmatprep.mubr.bf16.mxu0 0
    %318 = vmatmul.mubr.bf16.gmra.mxu0 %v283
    %v319 = vpop.f32.mrf.mxu0
    %v320 = vadd.f32 0.0, %v319
    %v321 = vpop.f32.mrf.mxu0
    %v322 = vpop.f32.mrf.mxu0
    %v323 = vadd.f32 0.0, %v322
    %v324 = vpop.f32.mrf.mxu0
    %325 = vdwg.mxu0
    %v326 = vadd.f32 %v240, %v320
    %v327 = vadd.f32 %v243, %v323
    %v328 = vld [vmem:[%s2] sm:$0x1]
    %v330 = vlaneseq
    %v331 = vshrl.u32 %v330, 7
    %v332 = vsub.s32 0, %v331
    %v333 = vrot.slane %v328, %v332
    %v335 = vmul.f32 %v326, %v333
    %v336 = vmul.f32 %v327, %v333
    %v337 = vld [vmem:[%s3] sm:$0x1]
    %v339 = vlaneseq
    %v340 = vshrl.u32 %v339, 7
    %v341 = vsub.s32 0, %v340
    %v342 = vrot.slane %v337, %v341
    %v344 = vadd.f32 %v335, %v342
    %v345 = vadd.f32 %v336, %v342
    %vm346 = vcmp.ge.f32.partialorder %v344, 0.0
    %vm347 = vcmp.ge.f32.partialorder %v345, 0.0
    %v348 = vmul.f32 %v344, 0.01
    %v349 = vmul.f32 %v345, 0.01
    %v350 = vsel %vm346, %v344, %v348
    %v351 = vsel %vm347, %v345, %v349
    %352 = vst [vmem:[#allocation3 + $0x1] sm:$0xff] %v350
    %353 = vst [vmem:[#allocation3 + $0x9] sm:$0xff] %v351
    %s354 = scalar_lea.vmem [#allocation2], 24
    %v355 = vld [vmem:[%s354] sm:$0xff]
    %v356 = vld [vmem:[%s354 + $0x8] sm:$0xff]
    %v357 = vpack.c.bf16 %v356, %v355
    %v358 = vld [vmem:[#allocation7] sm:$0xf]
    %v359 = vld [vmem:[#allocation7 + $0x4] sm:$0xf]
    %v360 = vld [vmem:[#allocation7 + $0x8] sm:$0xf]
    %v361 = vld [vmem:[#allocation7 + $0xc] sm:$0xf]
    %v362 = vld [vmem:[#allocation7 + $0x10] sm:$0xf]
    %v363 = vld [vmem:[#allocation7 + $0x14] sm:$0xf]
    %v364 = vld [vmem:[#allocation7 + $0x18] sm:$0xf]
    %v365 = vld [vmem:[#allocation7 + $0x1c] sm:$0xf]
    %v366 = vld [vmem:[%s354 + $0x1] sm:$0xff]
    %v367 = vld [vmem:[%s354 + $0x9] sm:$0xff]
    %v368 = vpack.c.bf16 %v367, %v366
    %v369 = vld [vmem:[%s101] sm:$0xf]
    %v370 = vld [vmem:[%s101 + $0x4] sm:$0xf]
    %v371 = vld [vmem:[%s101 + $0x8] sm:$0xf]
    %v372 = vld [vmem:[%s101 + $0xc] sm:$0xf]
    %v373 = vld [vmem:[%s101 + $0x10] sm:$0xf]
    %v374 = vld [vmem:[%s101 + $0x14] sm:$0xf]
    %v375 = vld [vmem:[%s101 + $0x18] sm:$0xf]
    %v376 = vld [vmem:[%s101 + $0x1c] sm:$0xf]
    %v385 = vunpack.c.l.b16 %v369
    %v386 = vunpack.c.l.b16 %v370
    %v387 = vunpack.c.l.b16 %v371
    %v388 = vunpack.c.l.b16 %v372
    %v389 = vunpack.c.l.b16 %v373
    %v390 = vunpack.c.l.b16 %v374
    %v391 = vunpack.c.l.b16 %v375
    %v392 = vunpack.c.l.b16 %v376
    %v393 = vpack.c.b16 %v386, %v385
    %v394 = vpack.c.b16 %v388, %v387
    %v395 = vpack.c.b16 %v390, %v389
    %v396 = vpack.c.b16 %v392, %v391
    %v402 = vsel %vm82, %v368, 0
    %404 = vmatprep.subr.bf16.mxu0 0
    %405 = vmatpush1.bf16.msra.mxu0 0
    %406 = vmatprep.subr.bf16.mxu0 0
    %407 = vmatpush1.bf16.msra.mxu0 0
    %408 = vmatprep.subr.bf16.mxu0 0
    %409 = vmatpush1.bf16.msra.mxu0 0
    %410 = vmatprep.subr.bf16.mxu0 0
    %411 = vmatpush1.bf16.msra.mxu0 0
    %412 = vmatprep.subr.bf16.mxu0 0
    %413 = vmatpush1.bf16.msra.mxu0 %v396
    %414 = vmatprep.subr.bf16.mxu0 0
    %415 = vmatpush1.bf16.msra.mxu0 %v395
    %416 = vmatprep.subr.bf16.mxu0 0
    %417 = vmatpush1.bf16.msra.mxu0 %v394
    %418 = vmatprep.subr.bf16.mxu0 0
    %419 = vmatpush1.bf16.msra.mxu0 %v393
    %420 = vmatprep.subr.bf16.mxu0 0
    %421 = vmatpush2.bf16.msra.mxu0 0
    %422 = vmatprep.subr.bf16.mxu0 0
    %423 = vmatpush2.bf16.msra.mxu0 0
    %424 = vmatprep.subr.bf16.mxu0 0
    %425 = vmatpush2.bf16.msra.mxu0 0
    %426 = vmatprep.subr.bf16.mxu0 0
    %427 = vmatpush2.bf16.msra.mxu0 0
    %428 = vmatprep.subr.bf16.mxu0 0
    %429 = vmatpush2.bf16.msra.mxu0 0
    %430 = vmatprep.subr.bf16.mxu0 0
    %431 = vmatpush2.bf16.msra.mxu0 0
    %432 = vmatprep.subr.bf16.mxu0 0
    %433 = vmatpush2.bf16.msra.mxu0 0
    %434 = vmatprep.subr.bf16.mxu0 0
    %435 = vmatpush2.bf16.msra.mxu0 0
    %436 = vmatprep.mubr.bf16.mxu0 0
    %437 = vmatmul.mubr.bf16.gmra.mxu0 %v402
    %v438 = vpop.f32.mrf.mxu0
    %v439 = vadd.f32 0.0, %v438
    %v440 = vpop.f32.mrf.mxu0
    %v441 = vpop.f32.mrf.mxu0
    %v442 = vadd.f32 0.0, %v441
    %v443 = vpop.f32.mrf.mxu0
    %444 = vdwg.mxu0
    %v453 = vunpack.c.l.b16 %v358
    %v454 = vunpack.c.l.b16 %v359
    %v455 = vunpack.c.l.b16 %v360
    %v456 = vunpack.c.l.b16 %v361
    %v457 = vunpack.c.l.b16 %v362
    %v458 = vunpack.c.l.b16 %v363
    %v459 = vunpack.c.l.b16 %v364
    %v460 = vunpack.c.l.b16 %v365
    %v461 = vpack.c.b16 %v454, %v453
    %v462 = vpack.c.b16 %v456, %v455
    %v463 = vpack.c.b16 %v458, %v457
    %v464 = vpack.c.b16 %v460, %v459
    %v470 = vsel %vm82, %v357, 0
    %472 = vmatprep.subr.bf16.mxu0 0
    %473 = vmatpush1.bf16.msra.mxu0 0
    %474 = vmatprep.subr.bf16.mxu0 0
    %475 = vmatpush1.bf16.msra.mxu0 0
    %476 = vmatprep.subr.bf16.mxu0 0
    %477 = vmatpush1.bf16.msra.mxu0 0
    %478 = vmatprep.subr.bf16.mxu0 0
    %479 = vmatpush1.bf16.msra.mxu0 0
    %480 = vmatprep.subr.bf16.mxu0 0
    %481 = vmatpush1.bf16.msra.mxu0 %v464
    %482 = vmatprep.subr.bf16.mxu0 0
    %483 = vmatpush1.bf16.msra.mxu0 %v463
    %484 = vmatprep.subr.bf16.mxu0 0
    %485 = vmatpush1.bf16.msra.mxu0 %v462
    %486 = vmatprep.subr.bf16.mxu0 0
    %487 = vmatpush1.bf16.msra.mxu0 %v461
    %488 = vmatprep.subr.bf16.mxu0 0
    %489 = vmatpush2.bf16.msra.mxu0 0
    %490 = vmatprep.subr.bf16.mxu0 0
    %491 = vmatpush2.bf16.msra.mxu0 0
    %492 = vmatprep.subr.bf16.mxu0 0
    %493 = vmatpush2.bf16.msra.mxu0 0
    %494 = vmatprep.subr.bf16.mxu0 0
    %495 = vmatpush2.bf16.msra.mxu0 0
    %496 = vmatprep.subr.bf16.mxu0 0
    %497 = vmatpush2.bf16.msra.mxu0 0
    %498 = vmatprep.subr.bf16.mxu0 0
    %499 = vmatpush2.bf16.msra.mxu0 0
    %500 = vmatprep.subr.bf16.mxu0 0
    %501 = vmatpush2.bf16.msra.mxu0 0
    %502 = vmatprep.subr.bf16.mxu0 0
    %503 = vmatpush2.bf16.msra.mxu0 0
    %504 = vmatprep.mubr.bf16.mxu0 0
    %505 = vmatmul.mubr.bf16.gmra.mxu0 %v470
    %v506 = vpop.f32.mrf.mxu0
    %v507 = vadd.f32 %v439, %v506
    %v508 = vpop.f32.mrf.mxu0
    %v509 = vpop.f32.mrf.mxu0
    %v510 = vadd.f32 %v442, %v509
    %v511 = vpop.f32.mrf.mxu0
    %512 = vdwg.mxu0
    %v513 = vld [vmem:[%s354 + $0x2] sm:$0xff]
    %v514 = vld [vmem:[%s354 + $0xa] sm:$0xff]
    %v515 = vpack.c.bf16 %v514, %v513
    %v516 = vld [vmem:[%s249] sm:$0xf]
    %v517 = vld [vmem:[%s249 + $0x4] sm:$0xf]
    %v518 = vld [vmem:[%s249 + $0x8] sm:$0xf]
    %v519 = vld [vmem:[%s249 + $0xc] sm:$0xf]
    %v520 = vld [vmem:[%s249 + $0x10] sm:$0xf]
    %v521 = vld [vmem:[%s249 + $0x14] sm:$0xf]
    %v522 = vld [vmem:[%s249 + $0x18] sm:$0xf]
    %v523 = vld [vmem:[%s249 + $0x1c] sm:$0xf]
    %v532 = vunpack.c.l.b16 %v516
    %v533 = vunpack.c.l.b16 %v517
    %v534 = vunpack.c.l.b16 %v518
    %v535 = vunpack.c.l.b16 %v519
    %v536 = vunpack.c.l.b16 %v520
    %v537 = vunpack.c.l.b16 %v521
    %v538 = vunpack.c.l.b16 %v522
    %v539 = vunpack.c.l.b16 %v523
    %v540 = vpack.c.b16 %v533, %v532
    %v541 = vpack.c.b16 %v535, %v534
    %v542 = vpack.c.b16 %v537, %v536
    %v543 = vpack.c.b16 %v539, %v538
    %v549 = vsel %vm82, %v515, 0
    %551 = vmatprep.subr.bf16.mxu0 0
    %552 = vmatpush1.bf16.msra.mxu0 0
    %553 = vmatprep.subr.bf16.mxu0 0
    %554 = vmatpush1.bf16.msra.mxu0 0
    %555 = vmatprep.subr.bf16.mxu0 0
    %556 = vmatpush1.bf16.msra.mxu0 0
    %557 = vmatprep.subr.bf16.mxu0 0
    %558 = vmatpush1.bf16.msra.mxu0 0
    %559 = vmatprep.subr.bf16.mxu0 0
    %560 = vmatpush1.bf16.msra.mxu0 %v543
    %561 = vmatprep.subr.bf16.mxu0 0
    %562 = vmatpush1.bf16.msra.mxu0 %v542
    %563 = vmatprep.subr.bf16.mxu0 0
    %564 = vmatpush1.bf16.msra.mxu0 %v541
    %565 = vmatprep.subr.bf16.mxu0 0
    %566 = vmatpush1.bf16.msra.mxu0 %v540
    %567 = vmatprep.subr.bf16.mxu0 0
    %568 = vmatpush2.bf16.msra.mxu0 0
    %569 = vmatprep.subr.bf16.mxu0 0
    %570 = vmatpush2.bf16.msra.mxu0 0
    %571 = vmatprep.subr.bf16.mxu0 0
    %572 = vmatpush2.bf16.msra.mxu0 0
    %573 = vmatprep.subr.bf16.mxu0 0
    %574 = vmatpush2.bf16.msra.mxu0 0
    %575 = vmatprep.subr.bf16.mxu0 0
    %576 = vmatpush2.bf16.msra.mxu0 0
    %577 = vmatprep.subr.bf16.mxu0 0
    %578 = vmatpush2.bf16.msra.mxu0 0
    %579 = vmatprep.subr.bf16.mxu0 0
    %580 = vmatpush2.bf16.msra.mxu0 0
    %581 = vmatprep.subr.bf16.mxu0 0
    %582 = vmatpush2.bf16.msra.mxu0 0
    %583 = vmatprep.mubr.bf16.mxu0 0
    %584 = vmatmul.mubr.bf16.gmra.mxu0 %v549
    %v585 = vpop.f32.mrf.mxu0
    %v586 = vadd.f32 0.0, %v585
    %v587 = vpop.f32.mrf.mxu0
    %v588 = vpop.f32.mrf.mxu0
    %v589 = vadd.f32 0.0, %v588
    %v590 = vpop.f32.mrf.mxu0
    %591 = vdwg.mxu0
    %v592 = vadd.f32 %v507, %v586
    %v593 = vadd.f32 %v510, %v589
    %v594 = vld [vmem:[%s2] sm:$0x1]
    %v596 = vlaneseq
    %v597 = vshrl.u32 %v596, 7
    %v598 = vsub.s32 0, %v597
    %v599 = vrot.slane %v594, %v598
    %v601 = vmul.f32 %v592, %v599
    %v602 = vmul.f32 %v593, %v599
    %v603 = vld [vmem:[%s3] sm:$0x1]
    %v605 = vlaneseq
    %v606 = vshrl.u32 %v605, 7
    %v607 = vsub.s32 0, %v606
    %v608 = vrot.slane %v603, %v607
    %v610 = vadd.f32 %v601, %v608
    %v611 = vadd.f32 %v602, %v608
    %vm612 = vcmp.ge.f32.partialorder %v610, 0.0
    %vm613 = vcmp.ge.f32.partialorder %v611, 0.0
    %v614 = vmul.f32 %v610, 0.01
    %v615 = vmul.f32 %v611, 0.01
    %v616 = vsel %vm612, %v610, %v614
    %v617 = vsel %vm613, %v611, %v615
    %s618 = scalar_lea.vmem [#allocation3], 24
    %619 = vst [vmem:[%s618 + $0x1] sm:$0xff] %v616
    %620 = vst [vmem:[%s618 + $0x9] sm:$0xff] %v617
    %v621 = vld [vmem:[#allocation3] sm:$0xff]
    %v622 = vld [vmem:[#allocation3 + $0x8] sm:$0xff]
    %v623 = vpack.c.bf16 %v622, %v621
    %v624 = vld [vmem:[#allocation9] sm:$0xf]
    %v625 = vld [vmem:[#allocation9 + $0x4] sm:$0xf]
    %v626 = vld [vmem:[#allocation9 + $0x8] sm:$0xf]
    %v627 = vld [vmem:[#allocation9 + $0xc] sm:$0xf]
    %v628 = vld [vmem:[#allocation9 + $0x10] sm:$0xf]
    %v629 = vld [vmem:[#allocation9 + $0x14] sm:$0xf]
    %v630 = vld [vmem:[#allocation9 + $0x18] sm:$0xf]
    %v631 = vld [vmem:[#allocation9 + $0x1c] sm:$0xf]
    %v632 = vld [vmem:[#allocation9 + $0x20] sm:$0xf]
    %v633 = vld [vmem:[#allocation9 + $0x24] sm:$0xf]
    %v634 = vld [vmem:[#allocation9 + $0x28] sm:$0xf]
    %v635 = vld [vmem:[#allocation9 + $0x2c] sm:$0xf]
    %v636 = vld [vmem:[#allocation9 + $0x30] sm:$0xf]
    %v637 = vld [vmem:[#allocation9 + $0x34] sm:$0xf]
    %v638 = vld [vmem:[#allocation9 + $0x38] sm:$0xf]
    %v639 = vld [vmem:[#allocation9 + $0x3c] sm:$0xf]
    %v640 = vld [vmem:[#allocation3 + $0x1] sm:$0xff]
    %v641 = vld [vmem:[#allocation3 + $0x9] sm:$0xff]
    %v642 = vpack.c.bf16 %v641, %v640
    %s643 = scalar_lea.vmem [#allocation9], 64
    %v644 = vld [vmem:[%s643] sm:$0xf]
    %v645 = vld [vmem:[%s643 + $0x4] sm:$0xf]
    %v646 = vld [vmem:[%s643 + $0x8] sm:$0xf]
    %v647 = vld [vmem:[%s643 + $0xc] sm:$0xf]
    %v648 = vld [vmem:[%s643 + $0x10] sm:$0xf]
    %v649 = vld [vmem:[%s643 + $0x14] sm:$0xf]
    %v650 = vld [vmem:[%s643 + $0x18] sm:$0xf]
    %v651 = vld [vmem:[%s643 + $0x1c] sm:$0xf]
    %v652 = vld [vmem:[%s643 + $0x20] sm:$0xf]
    %v653 = vld [vmem:[%s643 + $0x24] sm:$0xf]
    %v654 = vld [vmem:[%s643 + $0x28] sm:$0xf]
    %v655 = vld [vmem:[%s643 + $0x2c] sm:$0xf]
    %v656 = vld [vmem:[%s643 + $0x30] sm:$0xf]
    %v657 = vld [vmem:[%s643 + $0x34] sm:$0xf]
    %v658 = vld [vmem:[%s643 + $0x38] sm:$0xf]
    %v659 = vld [vmem:[%s643 + $0x3c] sm:$0xf]
    %v676 = vunpack.c.l.b16 %v644
    %v677 = vunpack.c.l.b16 %v645
    %v678 = vunpack.c.l.b16 %v646
    %v679 = vunpack.c.l.b16 %v647
    %v680 = vunpack.c.l.b16 %v648
    %v681 = vunpack.c.l.b16 %v649
    %v682 = vunpack.c.l.b16 %v650
    %v683 = vunpack.c.l.b16 %v651
    %v684 = vunpack.c.l.b16 %v652
    %v685 = vunpack.c.l.b16 %v653
    %v686 = vunpack.c.l.b16 %v654
    %v687 = vunpack.c.l.b16 %v655
    %v688 = vunpack.c.l.b16 %v656
    %v689 = vunpack.c.l.b16 %v657
    %v690 = vunpack.c.l.b16 %v658
    %v691 = vunpack.c.l.b16 %v659
    %v692 = vpack.c.b16 %v677, %v676
    %v693 = vpack.c.b16 %v679, %v678
    %v694 = vpack.c.b16 %v681, %v680
    %v695 = vpack.c.b16 %v683, %v682
    %v696 = vpack.c.b16 %v685, %v684
    %v697 = vpack.c.b16 %v687, %v686
    %v698 = vpack.c.b16 %v689, %v688
    %v699 = vpack.c.b16 %v691, %v690
    %708 = vmatprep.subr.bf16.mxu0 0
    %709 = vmatpush1.bf16.msra.mxu0 %v699
    %710 = vmatprep.subr.bf16.mxu0 0
    %711 = vmatpush1.bf16.msra.mxu0 %v698
    %712 = vmatprep.subr.bf16.mxu0 0
    %713 = vmatpush1.bf16.msra.mxu0 %v697
    %714 = vmatprep.subr.bf16.mxu0 0
    %715 = vmatpush1.bf16.msra.mxu0 %v696
    %716 = vmatprep.subr.bf16.mxu0 0
    %717 = vmatpush1.bf16.msra.mxu0 %v695
    %718 = vmatprep.subr.bf16.mxu0 0
    %719 = vmatpush1.bf16.msra.mxu0 %v694
    %720 = vmatprep.subr.bf16.mxu0 0
    %721 = vmatpush1.bf16.msra.mxu0 %v693
    %722 = vmatprep.subr.bf16.mxu0 0
    %723 = vmatpush1.bf16.msra.mxu0 %v692
    %724 = vmatprep.subr.bf16.mxu0 0
    %725 = vmatpush2.bf16.msra.mxu0 0
    %726 = vmatprep.subr.bf16.mxu0 0
    %727 = vmatpush2.bf16.msra.mxu0 0
    %728 = vmatprep.subr.bf16.mxu0 0
    %729 = vmatpush2.bf16.msra.mxu0 0
    %730 = vmatprep.subr.bf16.mxu0 0
    %731 = vmatpush2.bf16.msra.mxu0 0
    %732 = vmatprep.subr.bf16.mxu0 0
    %733 = vmatpush2.bf16.msra.mxu0 0
    %734 = vmatprep.subr.bf16.mxu0 0
    %735 = vmatpush2.bf16.msra.mxu0 0
    %736 = vmatprep.subr.bf16.mxu0 0
    %737 = vmatpush2.bf16.msra.mxu0 0
    %738 = vmatprep.subr.bf16.mxu0 0
    %739 = vmatpush2.bf16.msra.mxu0 0
    %740 = vmatprep.mubr.bf16.mxu0 0
    %741 = vmatmul.mubr.bf16.gmra.mxu0 %v642
    %v742 = vpop.f32.mrf.mxu0
    %v743 = vadd.f32 0.0, %v742
    %v744 = vpop.f32.mrf.mxu0
    %v745 = vpop.f32.mrf.mxu0
    %v746 = vadd.f32 0.0, %v745
    %v747 = vpop.f32.mrf.mxu0
    %748 = vdwg.mxu0
    %v765 = vunpack.c.l.b16 %v624
    %v766 = vunpack.c.l.b16 %v625
    %v767 = vunpack.c.l.b16 %v626
    %v768 = vunpack.c.l.b16 %v627
    %v769 = vunpack.c.l.b16 %v628
    %v770 = vunpack.c.l.b16 %v629
    %v771 = vunpack.c.l.b16 %v630
    %v772 = vunpack.c.l.b16 %v631
    %v773 = vunpack.c.l.b16 %v632
    %v774 = vunpack.c.l.b16 %v633
    %v775 = vunpack.c.l.b16 %v634
    %v776 = vunpack.c.l.b16 %v635
    %v777 = vunpack.c.l.b16 %v636
    %v778 = vunpack.c.l.b16 %v637
    %v779 = vunpack.c.l.b16 %v638
    %v780 = vunpack.c.l.b16 %v639
    %v781 = vpack.c.b16 %v766, %v765
    %v782 = vpack.c.b16 %v768, %v767
    %v783 = vpack.c.b16 %v770, %v769
    %v784 = vpack.c.b16 %v772, %v771
    %v785 = vpack.c.b16 %v774, %v773
    %v786 = vpack.c.b16 %v776, %v775
    %v787 = vpack.c.b16 %v778, %v777
    %v788 = vpack.c.b16 %v780, %v779
    %797 = vmatprep.subr.bf16.mxu0 0
    %798 = vmatpush1.bf16.msra.mxu0 %v788
    %799 = vmatprep.subr.bf16.mxu0 0
    %800 = vmatpush1.bf16.msra.mxu0 %v787
    %801 = vmatprep.subr.bf16.mxu0 0
    %802 = vmatpush1.bf16.msra.mxu0 %v786
    %803 = vmatprep.subr.bf16.mxu0 0
    %804 = vmatpush1.bf16.msra.mxu0 %v785
    %805 = vmatprep.subr.bf16.mxu0 0
    %806 = vmatpush1.bf16.msra.mxu0 %v784
    %807 = vmatprep.subr.bf16.mxu0 0
    %808 = vmatpush1.bf16.msra.mxu0 %v783
    %809 = vmatprep.subr.bf16.mxu0 0
    %810 = vmatpush1.bf16.msra.mxu0 %v782
    %811 = vmatprep.subr.bf16.mxu0 0
    %812 = vmatpush1.bf16.msra.mxu0 %v781
    %813 = vmatprep.subr.bf16.mxu0 0
    %814 = vmatpush2.bf16.msra.mxu0 0
    %815 = vmatprep.subr.bf16.mxu0 0
    %816 = vmatpush2.bf16.msra.mxu0 0
    %817 = vmatprep.subr.bf16.mxu0 0
    %818 = vmatpush2.bf16.msra.mxu0 0
    %819 = vmatprep.subr.bf16.mxu0 0
    %820 = vmatpush2.bf16.msra.mxu0 0
    %821 = vmatprep.subr.bf16.mxu0 0
    %822 = vmatpush2.bf16.msra.mxu0 0
    %823 = vmatprep.subr.bf16.mxu0 0
    %824 = vmatpush2.bf16.msra.mxu0 0
    %825 = vmatprep.subr.bf16.mxu0 0
    %826 = vmatpush2.bf16.msra.mxu0 0
    %827 = vmatprep.subr.bf16.mxu0 0
    %828 = vmatpush2.bf16.msra.mxu0 0
    %829 = vmatprep.mubr.bf16.mxu0 0
    %830 = vmatmul.mubr.bf16.gmra.mxu0 %v623
    %v831 = vpop.f32.mrf.mxu0
    %v832 = vadd.f32 %v743, %v831
    %v833 = vpop.f32.mrf.mxu0
    %v834 = vpop.f32.mrf.mxu0
    %v835 = vadd.f32 %v746, %v834
    %v836 = vpop.f32.mrf.mxu0
    %837 = vdwg.mxu0
    %v838 = vld [vmem:[#allocation3 + $0x2] sm:$0xff]
    %v839 = vld [vmem:[#allocation3 + $0xa] sm:$0xff]
    %v840 = vpack.c.bf16 %v839, %v838
    %s841 = scalar_lea.vmem [#allocation9], 128
    %v842 = vld [vmem:[%s841] sm:$0xf]
    %v843 = vld [vmem:[%s841 + $0x4] sm:$0xf]
    %v844 = vld [vmem:[%s841 + $0x8] sm:$0xf]
    %v845 = vld [vmem:[%s841 + $0xc] sm:$0xf]
    %v846 = vld [vmem:[%s841 + $0x10] sm:$0xf]
    %v847 = vld [vmem:[%s841 + $0x14] sm:$0xf]
    %v848 = vld [vmem:[%s841 + $0x18] sm:$0xf]
    %v849 = vld [vmem:[%s841 + $0x1c] sm:$0xf]
    %v850 = vld [vmem:[%s841 + $0x20] sm:$0xf]
    %v851 = vld [vmem:[%s841 + $0x24] sm:$0xf]
    %v852 = vld [vmem:[%s841 + $0x28] sm:$0xf]
    %v853 = vld [vmem:[%s841 + $0x2c] sm:$0xf]
    %v854 = vld [vmem:[%s841 + $0x30] sm:$0xf]
    %v855 = vld [vmem:[%s841 + $0x34] sm:$0xf]
    %v856 = vld [vmem:[%s841 + $0x38] sm:$0xf]
    %v857 = vld [vmem:[%s841 + $0x3c] sm:$0xf]
    %v874 = vunpack.c.l.b16 %v842
    %v875 = vunpack.c.l.b16 %v843
    %v876 = vunpack.c.l.b16 %v844
    %v877 = vunpack.c.l.b16 %v845
    %v878 = vunpack.c.l.b16 %v846
    %v879 = vunpack.c.l.b16 %v847
    %v880 = vunpack.c.l.b16 %v848
    %v881 = vunpack.c.l.b16 %v849
    %v882 = vunpack.c.l.b16 %v850
    %v883 = vunpack.c.l.b16 %v851
    %v884 = vunpack.c.l.b16 %v852
    %v885 = vunpack.c.l.b16 %v853
    %v886 = vunpack.c.l.b16 %v854
    %v887 = vunpack.c.l.b16 %v855
    %v888 = vunpack.c.l.b16 %v856
    %v889 = vunpack.c.l.b16 %v857
    %v890 = vpack.c.b16 %v875, %v874
    %v891 = vpack.c.b16 %v877, %v876
    %v892 = vpack.c.b16 %v879, %v878
    %v893 = vpack.c.b16 %v881, %v880
    %v894 = vpack.c.b16 %v883, %v882
    %v895 = vpack.c.b16 %v885, %v884
    %v896 = vpack.c.b16 %v887, %v886
    %v897 = vpack.c.b16 %v889, %v888
    %906 = vmatprep.subr.bf16.mxu0 0
    %907 = vmatpush1.bf16.msra.mxu0 %v897
    %908 = vmatprep.subr.bf16.mxu0 0
    %909 = vmatpush1.bf16.msra.mxu0 %v896
    %910 = vmatprep.subr.bf16.mxu0 0
    %911 = vmatpush1.bf16.msra.mxu0 %v895
    %912 = vmatprep.subr.bf16.mxu0 0
    %913 = vmatpush1.bf16.msra.mxu0 %v894
    %914 = vmatprep.subr.bf16.mxu0 0
    %915 = vmatpush1.bf16.msra.mxu0 %v893
    %916 = vmatprep.subr.bf16.mxu0 0
    %917 = vmatpush1.bf16.msra.mxu0 %v892
    %918 = vmatprep.subr.bf16.mxu0 0
    %919 = vmatpush1.bf16.msra.mxu0 %v891
    %920 = vmatprep.subr.bf16.mxu0 0
    %921 = vmatpush1.bf16.msra.mxu0 %v890
    %922 = vmatprep.subr.bf16.mxu0 0
    %923 = vmatpush2.bf16.msra.mxu0 0
    %924 = vmatprep.subr.bf16.mxu0 0
    %925 = vmatpush2.bf16.msra.mxu0 0
    %926 = vmatprep.subr.bf16.mxu0 0
    %927 = vmatpush2.bf16.msra.mxu0 0
    %928 = vmatprep.subr.bf16.mxu0 0
    %929 = vmatpush2.bf16.msra.mxu0 0
    %930 = vmatprep.subr.bf16.mxu0 0
    %931 = vmatpush2.bf16.msra.mxu0 0
    %932 = vmatprep.subr.bf16.mxu0 0
    %933 = vmatpush2.bf16.msra.mxu0 0
    %934 = vmatprep.subr.bf16.mxu0 0
    %935 = vmatpush2.bf16.msra.mxu0 0
    %936 = vmatprep.subr.bf16.mxu0 0
    %937 = vmatpush2.bf16.msra.mxu0 0
    %938 = vmatprep.mubr.bf16.mxu0 0
    %939 = vmatmul.mubr.bf16.gmra.mxu0 %v840
    %v940 = vpop.f32.mrf.mxu0
    %v941 = vadd.f32 0.0, %v940
    %v942 = vpop.f32.mrf.mxu0
    %v943 = vpop.f32.mrf.mxu0
    %v944 = vadd.f32 0.0, %v943
    %v945 = vpop.f32.mrf.mxu0
    %946 = vdwg.mxu0
    %v947 = vadd.f32 %v832, %v941
    %v948 = vadd.f32 %v835, %v944
    %v949 = vld [vmem:[%s5] sm:$0x1]
    %v951 = vlaneseq
    %v952 = vshrl.u32 %v951, 7
    %v953 = vsub.s32 0, %v952
    %v954 = vrot.slane %v949, %v953
    %v956 = vmul.f32 %v947, %v954
    %v957 = vmul.f32 %v948, %v954
    %v958 = vld [vmem:[%s6] sm:$0x1]
    %v960 = vlaneseq
    %v961 = vshrl.u32 %v960, 7
    %v962 = vsub.s32 0, %v961
    %v963 = vrot.slane %v958, %v962
    %v965 = vadd.f32 %v956, %v963
    %v966 = vadd.f32 %v957, %v963
    %vm967 = vcmp.ge.f32.partialorder %v965, 0.0
    %vm968 = vcmp.ge.f32.partialorder %v966, 0.0
    %v969 = vmul.f32 %v965, 0.01
    %v970 = vmul.f32 %v966, 0.01
    %v971 = vsel %vm967, %v965, %v969
    %v972 = vsel %vm968, %v966, %v970
    %973 = vst [vmem:[#allocation10] sm:$0xff] %v971
    %974 = vst [vmem:[#allocation10 + $0x8] sm:$0xff] %v972
    %v975 = vld [vmem:[%s618] sm:$0xff]
    %v976 = vld [vmem:[%s618 + $0x8] sm:$0xff]
    %v977 = vpack.c.bf16 %v976, %v975
    %v978 = vld [vmem:[#allocation9] sm:$0xf]
    %v979 = vld [vmem:[#allocation9 + $0x4] sm:$0xf]
    %v980 = vld [vmem:[#allocation9 + $0x8] sm:$0xf]
    %v981 = vld [vmem:[#allocation9 + $0xc] sm:$0xf]
    %v982 = vld [vmem:[#allocation9 + $0x10] sm:$0xf]
    %v983 = vld [vmem:[#allocation9 + $0x14] sm:$0xf]
    %v984 = vld [vmem:[#allocation9 + $0x18] sm:$0xf]
    %v985 = vld [vmem:[#allocation9 + $0x1c] sm:$0xf]
    %v986 = vld [vmem:[#allocation9 + $0x20] sm:$0xf]
    %v987 = vld [vmem:[#allocation9 + $0x24] sm:$0xf]
    %v988 = vld [vmem:[#allocation9 + $0x28] sm:$0xf]
    %v989 = vld [vmem:[#allocation9 + $0x2c] sm:$0xf]
    %v990 = vld [vmem:[#allocation9 + $0x30] sm:$0xf]
    %v991 = vld [vmem:[#allocation9 + $0x34] sm:$0xf]
    %v992 = vld [vmem:[#allocation9 + $0x38] sm:$0xf]
    %v993 = vld [vmem:[#allocation9 + $0x3c] sm:$0xf]
    %v994 = vld [vmem:[%s618 + $0x1] sm:$0xff]
    %v995 = vld [vmem:[%s618 + $0x9] sm:$0xff]
    %v996 = vpack.c.bf16 %v995, %v994
    %v997 = vld [vmem:[%s643] sm:$0xf]
    %v998 = vld [vmem:[%s643 + $0x4] sm:$0xf]
    %v999 = vld [vmem:[%s643 + $0x8] sm:$0xf]
    %v1000 = vld [vmem:[%s643 + $0xc] sm:$0xf]
    %v1001 = vld [vmem:[%s643 + $0x10] sm:$0xf]
    %v1002 = vld [vmem:[%s643 + $0x14] sm:$0xf]
    %v1003 = vld [vmem:[%s643 + $0x18] sm:$0xf]
    %v1004 = vld [vmem:[%s643 + $0x1c] sm:$0xf]
    %v1005 = vld [vmem:[%s643 + $0x20] sm:$0xf]
    %v1006 = vld [vmem:[%s643 + $0x24] sm:$0xf]
    %v1007 = vld [vmem:[%s643 + $0x28] sm:$0xf]
    %v1008 = vld [vmem:[%s643 + $0x2c] sm:$0xf]
    %v1009 = vld [vmem:[%s643 + $0x30] sm:$0xf]
    %v1010 = vld [vmem:[%s643 + $0x34] sm:$0xf]
    %v1011 = vld [vmem:[%s643 + $0x38] sm:$0xf]
    %v1012 = vld [vmem:[%s643 + $0x3c] sm:$0xf]
    %v1029 = vunpack.c.l.b16 %v997
    %v1030 = vunpack.c.l.b16 %v998
    %v1031 = vunpack.c.l.b16 %v999
    %v1032 = vunpack.c.l.b16 %v1000
    %v1033 = vunpack.c.l.b16 %v1001
    %v1034 = vunpack.c.l.b16 %v1002
    %v1035 = vunpack.c.l.b16 %v1003
    %v1036 = vunpack.c.l.b16 %v1004
    %v1037 = vunpack.c.l.b16 %v1005
    %v1038 = vunpack.c.l.b16 %v1006
    %v1039 = vunpack.c.l.b16 %v1007
    %v1040 = vunpack.c.l.b16 %v1008
    %v1041 = vunpack.c.l.b16 %v1009
    %v1042 = vunpack.c.l.b16 %v1010
    %v1043 = vunpack.c.l.b16 %v1011
    %v1044 = vunpack.c.l.b16 %v1012
    %v1045 = vpack.c.b16 %v1030, %v1029
    %v1046 = vpack.c.b16 %v1032, %v1031
    %v1047 = vpack.c.b16 %v1034, %v1033
    %v1048 = vpack.c.b16 %v1036, %v1035
    %v1049 = vpack.c.b16 %v1038, %v1037
    %v1050 = vpack.c.b16 %v1040, %v1039
    %v1051 = vpack.c.b16 %v1042, %v1041
    %v1052 = vpack.c.b16 %v1044, %v1043
    %1061 = vmatprep.subr.bf16.mxu0 0
    %1062 = vmatpush1.bf16.msra.mxu0 %v1052
    %1063 = vmatprep.subr.bf16.mxu0 0
    %1064 = vmatpush1.bf16.msra.mxu0 %v1051
    %1065 = vmatprep.subr.bf16.mxu0 0
    %1066 = vmatpush1.bf16.msra.mxu0 %v1050
    %1067 = vmatprep.subr.bf16.mxu0 0
    %1068 = vmatpush1.bf16.msra.mxu0 %v1049
    %1069 = vmatprep.subr.bf16.mxu0 0
    %1070 = vmatpush1.bf16.msra.mxu0 %v1048
    %1071 = vmatprep.subr.bf16.mxu0 0
    %1072 = vmatpush1.bf16.msra.mxu0 %v1047
    %1073 = vmatprep.subr.bf16.mxu0 0
    %1074 = vmatpush1.bf16.msra.mxu0 %v1046
    %1075 = vmatprep.subr.bf16.mxu0 0
    %1076 = vmatpush1.bf16.msra.mxu0 %v1045
    %1077 = vmatprep.subr.bf16.mxu0 0
    %1078 = vmatpush2.bf16.msra.mxu0 0
    %1079 = vmatprep.subr.bf16.mxu0 0
    %1080 = vmatpush2.bf16.msra.mxu0 0
    %1081 = vmatprep.subr.bf16.mxu0 0
    %1082 = vmatpush2.bf16.msra.mxu0 0
    %1083 = vmatprep.subr.bf16.mxu0 0
    %1084 = vmatpush2.bf16.msra.mxu0 0
    %1085 = vmatprep.subr.bf16.mxu0 0
    %1086 = vmatpush2.bf16.msra.mxu0 0
    %1087 = vmatprep.subr.bf16.mxu0 0
    %1088 = vmatpush2.bf16.msra.mxu0 0
    %1089 = vmatprep.subr.bf16.mxu0 0
    %1090 = vmatpush2.bf16.msra.mxu0 0
    %1091 = vmatprep.subr.bf16.mxu0 0
    %1092 = vmatpush2.bf16.msra.mxu0 0
    %1093 = vmatprep.mubr.bf16.mxu0 0
    %1094 = vmatmul.mubr.bf16.gmra.mxu0 %v996
    %v1095 = vpop.f32.mrf.mxu0
    %v1096 = vadd.f32 0.0, %v1095
    %v1097 = vpop.f32.mrf.mxu0
    %v1098 = vpop.f32.mrf.mxu0
    %v1099 = vadd.f32 0.0, %v1098
    %v1100 = vpop.f32.mrf.mxu0
    %1101 = vdwg.mxu0
    %v1118 = vunpack.c.l.b16 %v978
    %v1119 = vunpack.c.l.b16 %v979
    %v1120 = vunpack.c.l.b16 %v980
    %v1121 = vunpack.c.l.b16 %v981
    %v1122 = vunpack.c.l.b16 %v982
    %v1123 = vunpack.c.l.b16 %v983
    %v1124 = vunpack.c.l.b16 %v984
    %v1125 = vunpack.c.l.b16 %v985
    %v1126 = vunpack.c.l.b16 %v986
    %v1127 = vunpack.c.l.b16 %v987
    %v1128 = vunpack.c.l.b16 %v988
    %v1129 = vunpack.c.l.b16 %v989
    %v1130 = vunpack.c.l.b16 %v990
    %v1131 = vunpack.c.l.b16 %v991
    %v1132 = vunpack.c.l.b16 %v992
    %v1133 = vunpack.c.l.b16 %v993
    %v1134 = vpack.c.b16 %v1119, %v1118
    %v1135 = vpack.c.b16 %v1121, %v1120
    %v1136 = vpack.c.b16 %v1123, %v1122
    %v1137 = vpack.c.b16 %v1125, %v1124
    %v1138 = vpack.c.b16 %v1127, %v1126
    %v1139 = vpack.c.b16 %v1129, %v1128
    %v1140 = vpack.c.b16 %v1131, %v1130
    %v1141 = vpack.c.b16 %v1133, %v1132
    %1150 = vmatprep.subr.bf16.mxu0 0
    %1151 = vmatpush1.bf16.msra.mxu0 %v1141
    %1152 = vmatprep.subr.bf16.mxu0 0
    %1153 = vmatpush1.bf16.msra.mxu0 %v1140
    %1154 = vmatprep.subr.bf16.mxu0 0
    %1155 = vmatpush1.bf16.msra.mxu0 %v1139
    %1156 = vmatprep.subr.bf16.mxu0 0
    %1157 = vmatpush1.bf16.msra.mxu0 %v1138
    %1158 = vmatprep.subr.bf16.mxu0 0
    %1159 = vmatpush1.bf16.msra.mxu0 %v1137
    %1160 = vmatprep.subr.bf16.mxu0 0
    %1161 = vmatpush1.bf16.msra.mxu0 %v1136
    %1162 = vmatprep.subr.bf16.mxu0 0
    %1163 = vmatpush1.bf16.msra.mxu0 %v1135
    %1164 = vmatprep.subr.bf16.mxu0 0
    %1165 = vmatpush1.bf16.msra.mxu0 %v1134
    %1166 = vmatprep.subr.bf16.mxu0 0
    %1167 = vmatpush2.bf16.msra.mxu0 0
    %1168 = vmatprep.subr.bf16.mxu0 0
    %1169 = vmatpush2.bf16.msra.mxu0 0
    %1170 = vmatprep.subr.bf16.mxu0 0
    %1171 = vmatpush2.bf16.msra.mxu0 0
    %1172 = vmatprep.subr.bf16.mxu0 0
    %1173 = vmatpush2.bf16.msra.mxu0 0
    %1174 = vmatprep.subr.bf16.mxu0 0
    %1175 = vmatpush2.bf16.msra.mxu0 0
    %1176 = vmatprep.subr.bf16.mxu0 0
    %1177 = vmatpush2.bf16.msra.mxu0 0
    %1178 = vmatprep.subr.bf16.mxu0 0
    %1179 = vmatpush2.bf16.msra.mxu0 0
    %1180 = vmatprep.subr.bf16.mxu0 0
    %1181 = vmatpush2.bf16.msra.mxu0 0
    %1182 = vmatprep.mubr.bf16.mxu0 0
    %1183 = vmatmul.mubr.bf16.gmra.mxu0 %v977
    %v1184 = vpop.f32.mrf.mxu0
    %v1185 = vadd.f32 %v1096, %v1184
    %v1186 = vpop.f32.mrf.mxu0
    %v1187 = vpop.f32.mrf.mxu0
    %v1188 = vadd.f32 %v1099, %v1187
    %v1189 = vpop.f32.mrf.mxu0
    %1190 = vdwg.mxu0
    %v1191 = vld [vmem:[%s618 + $0x2] sm:$0xff]
    %v1192 = vld [vmem:[%s618 + $0xa] sm:$0xff]
    %v1193 = vpack.c.bf16 %v1192, %v1191
    %v1194 = vld [vmem:[%s841] sm:$0xf]
    %v1195 = vld [vmem:[%s841 + $0x4] sm:$0xf]
    %v1196 = vld [vmem:[%s841 + $0x8] sm:$0xf]
    %v1197 = vld [vmem:[%s841 + $0xc] sm:$0xf]
    %v1198 = vld [vmem:[%s841 + $0x10] sm:$0xf]
    %v1199 = vld [vmem:[%s841 + $0x14] sm:$0xf]
    %v1200 = vld [vmem:[%s841 + $0x18] sm:$0xf]
    %v1201 = vld [vmem:[%s841 + $0x1c] sm:$0xf]
    %v1202 = vld [vmem:[%s841 + $0x20] sm:$0xf]
    %v1203 = vld [vmem:[%s841 + $0x24] sm:$0xf]
    %v1204 = vld [vmem:[%s841 + $0x28] sm:$0xf]
    %v1205 = vld [vmem:[%s841 + $0x2c] sm:$0xf]
    %v1206 = vld [vmem:[%s841 + $0x30] sm:$0xf]
    %v1207 = vld [vmem:[%s841 + $0x34] sm:$0xf]
    %v1208 = vld [vmem:[%s841 + $0x38] sm:$0xf]
    %v1209 = vld [vmem:[%s841 + $0x3c] sm:$0xf]
    %v1226 = vunpack.c.l.b16 %v1194
    %v1227 = vunpack.c.l.b16 %v1195
    %v1228 = vunpack.c.l.b16 %v1196
    %v1229 = vunpack.c.l.b16 %v1197
    %v1230 = vunpack.c.l.b16 %v1198
    %v1231 = vunpack.c.l.b16 %v1199
    %v1232 = vunpack.c.l.b16 %v1200
    %v1233 = vunpack.c.l.b16 %v1201
    %v1234 = vunpack.c.l.b16 %v1202
    %v1235 = vunpack.c.l.b16 %v1203
    %v1236 = vunpack.c.l.b16 %v1204
    %v1237 = vunpack.c.l.b16 %v1205
    %v1238 = vunpack.c.l.b16 %v1206
    %v1239 = vunpack.c.l.b16 %v1207
    %v1240 = vunpack.c.l.b16 %v1208
    %v1241 = vunpack.c.l.b16 %v1209
    %v1242 = vpack.c.b16 %v1227, %v1226
    %v1243 = vpack.c.b16 %v1229, %v1228
    %v1244 = vpack.c.b16 %v1231, %v1230
    %v1245 = vpack.c.b16 %v1233, %v1232
    %v1246 = vpack.c.b16 %v1235, %v1234
    %v1247 = vpack.c.b16 %v1237, %v1236
    %v1248 = vpack.c.b16 %v1239, %v1238
    %v1249 = vpack.c.b16 %v1241, %v1240
    %1258 = vmatprep.subr.bf16.mxu0 0
    %1259 = vmatpush1.bf16.msra.mxu0 %v1249
    %1260 = vmatprep.subr.bf16.mxu0 0
    %1261 = vmatpush1.bf16.msra.mxu0 %v1248
    %1262 = vmatprep.subr.bf16.mxu0 0
    %1263 = vmatpush1.bf16.msra.mxu0 %v1247
    %1264 = vmatprep.subr.bf16.mxu0 0
    %1265 = vmatpush1.bf16.msra.mxu0 %v1246
    %1266 = vmatprep.subr.bf16.mxu0 0
    %1267 = vmatpush1.bf16.msra.mxu0 %v1245
    %1268 = vmatprep.subr.bf16.mxu0 0
    %1269 = vmatpush1.bf16.msra.mxu0 %v1244
    %1270 = vmatprep.subr.bf16.mxu0 0
    %1271 = vmatpush1.bf16.msra.mxu0 %v1243
    %1272 = vmatprep.subr.bf16.mxu0 0
    %1273 = vmatpush1.bf16.msra.mxu0 %v1242
    %1274 = vmatprep.subr.bf16.mxu0 0
    %1275 = vmatpush2.bf16.msra.mxu0 0
    %1276 = vmatprep.subr.bf16.mxu0 0
    %1277 = vmatpush2.bf16.msra.mxu0 0
    %1278 = vmatprep.subr.bf16.mxu0 0
    %1279 = vmatpush2.bf16.msra.mxu0 0
    %1280 = vmatprep.subr.bf16.mxu0 0
    %1281 = vmatpush2.bf16.msra.mxu0 0
    %1282 = vmatprep.subr.bf16.mxu0 0
    %1283 = vmatpush2.bf16.msra.mxu0 0
    %1284 = vmatprep.subr.bf16.mxu0 0
    %1285 = vmatpush2.bf16.msra.mxu0 0
    %1286 = vmatprep.subr.bf16.mxu0 0
    %1287 = vmatpush2.bf16.msra.mxu0 0
    %1288 = vmatprep.subr.bf16.mxu0 0
    %1289 = vmatpush2.bf16.msra.mxu0 0
    %1290 = vmatprep.mubr.bf16.mxu0 0
    %1291 = vmatmul.mubr.bf16.gmra.mxu0 %v1193
    %v1292 = vpop.f32.mrf.mxu0
    %v1293 = vadd.f32 0.0, %v1292
    %v1294 = vpop.f32.mrf.mxu0
    %v1295 = vpop.f32.mrf.mxu0
    %v1296 = vadd.f32 0.0, %v1295
    %v1297 = vpop.f32.mrf.mxu0
    %1298 = vdwg.mxu0
    %v1299 = vadd.f32 %v1185, %v1293
    %v1300 = vadd.f32 %v1188, %v1296
    %v1301 = vld [vmem:[%s5] sm:$0x1]
    %v1303 = vlaneseq
    %v1304 = vshrl.u32 %v1303, 7
    %v1305 = vsub.s32 0, %v1304
    %v1306 = vrot.slane %v1301, %v1305
    %v1308 = vmul.f32 %v1299, %v1306
    %v1309 = vmul.f32 %v1300, %v1306
    %v1310 = vld [vmem:[%s6] sm:$0x1]
    %v1312 = vlaneseq
    %v1313 = vshrl.u32 %v1312, 7
    %v1314 = vsub.s32 0, %v1313
    %v1315 = vrot.slane %v1310, %v1314
    %v1317 = vadd.f32 %v1308, %v1315
    %v1318 = vadd.f32 %v1309, %v1315
    %vm1319 = vcmp.ge.f32.partialorder %v1317, 0.0
    %vm1320 = vcmp.ge.f32.partialorder %v1318, 0.0
    %v1321 = vmul.f32 %v1317, 0.01
    %v1322 = vmul.f32 %v1318, 0.01
    %v1323 = vsel %vm1319, %v1317, %v1321
    %v1324 = vsel %vm1320, %v1318, %v1322
    %s1325 = scalar_lea.vmem [#allocation10], 16
    %1326 = vst [vmem:[%s1325] sm:$0xff] %v1323
    %1327 = vst [vmem:[%s1325 + $0x8] sm:$0xff] %v1324
    // Predicated region
    $region42: #{tpu_custom_call.1} parent=1 // pred_check
      _
    $region43: #{tpu_custom_call.1} parent=1 // pred_check_branch
      %1329 = sbr.rel (0) target = $region45
    $region44: #{tpu_custom_call.1} parent=1 // pred_region
      %s1331 = ssub.s32 512, 512
      %1332 = vsyncadd [#allocation6], %s1331
      %s1333 = sshll.u32 [#allocation10], 4
      %s1334 = int_to_ptr.vmem [resolvable:$true] %s1333
      %1339 = dma.vmem_to_hbm [thread:$0]  %s1334, 512, %s7, [#allocation6], 128, 128, 8
    $region45: #{tpu_custom_call.1} parent=1 // pred_fallthru
      _
    // Predicated region
    $region46: #{tpu_custom_call.1} parent=1 // pred_check
      _
    $region47: #{tpu_custom_call.1} parent=1 // pred_check_branch
      %1341 = sbr.rel (0) target = $region49
    $region48: #{tpu_custom_call.1} parent=1 // pred_region
      %1342 = dma.done [#allocation6], 512
    $region49: #{tpu_custom_call.1} parent=1 // pred_fallthru
      _
    %1343 = vsyncpa [#allocation5], 1
    %1344 = vsyncpa [#allocation8], 1
    %1345 = vsyncpa [#allocation6], 1

</llo_original>
